<compile_context>
chip_gen: v6e
topology: v6e:2x2x1
jax: 0.10.0
libtpu: 0.0.40
codegen_flags: <defaults>
</compile_context>

<pallas_src>
import functools

import jax
import jax.numpy as jnp
from jax.experimental import pallas as pl
from jax.experimental.pallas import tpu as pltpu


# ----------------------------------------------------------------------------
# Fused kernel: batched LSTM encoder (full sequence) + CNN decoder, single grid step
# ----------------------------------------------------------------------------
def _fused_kernel(x_ref, wih_ref, whh_ref, w1_ref, w2_ref, bias_ref,
                  out_ref, gx_ref, *, T, B, H, O_pad):
    f32 = jnp.float32
    wih = wih_ref[...]                      # (C_in, 4H)   (possibly bf16)
    whh = whh_ref[...]                      # (H, 4H)
    w1 = w1_ref[...]                        # (H, H)       BN folded in
    w2 = w2_ref[...]                        # (H, O_pad)
    biases = bias_ref[...]                  # (3, P) packed slab, f32
    b_lstm = biases[0:1, :4 * H]            # (1, 4H)  = b_ih + b_hh
    b1 = biases[1:2, :H]                    # (1, H)   = conv1 bias folded with BN
    b2 = biases[2:3, :O_pad]                # (1, O_pad)

    # --- Stage input projections for every timestep (independent -> MXU-pipelined). ---
    def proj_step(t, carry):
        gx_ref[t] = (jnp.dot(x_ref[t], wih, preferred_element_type=f32) + b_lstm)
        return carry

    jax.lax.fori_loop(0, T, proj_step, 0, unroll=min(T, 8))

    # --- Batched recurrence: each step is one (B,H)x(H,4H) matmul on the serial path. ---
    def lstm_step(t, carry):
        h, c = carry
        gates = gx_ref[t] + jnp.dot(h.astype(whh.dtype), whh, preferred_element_type=f32)
        i_g = jax.nn.sigmoid(gates[:, 0 * H:1 * H])
        f_g = jax.nn.sigmoid(gates[:, 1 * H:2 * H])
        g_g = jnp.tanh(gates[:, 2 * H:3 * H])
        o_g = jax.nn.sigmoid(gates[:, 3 * H:4 * H])
        c_new = f_g * c + i_g * g_g
        h_new = o_g * jnp.tanh(c_new)
        return h_new, c_new

    h0 = jnp.zeros((B, H), f32)
    c0 = jnp.zeros((B, H), f32)
    h, _ = jax.lax.fori_loop(0, T, lstm_step, (h0, c0), unroll=min(T, 8))

    # --- Decoder on the final hidden state: (conv1 + BN folded) -> ReLU -> conv2 (lane-padded). ---
    y = jnp.dot(h.astype(w1.dtype), w1, preferred_element_type=f32) + b1
    y = jnp.maximum(y, 0.0)
    y = jnp.dot(y.astype(w2.dtype), w2, preferred_element_type=f32) + b2
    out_ref[...] = y.astype(out_ref.dtype)           # (B, O_pad) single lane-dense store


def forward_pallas(params, x, *, matmul_dtype=jnp.float32):
    """x: (T, B, C_in)  ->  (B, 1, output_size), matching EncoderLSTMDecoderCNN.forward.

    matmul_dtype=jnp.bfloat16 is recommended on v6e/v7x (f32 accumulation & f32 state are kept);
    leave f32 on v5e and when exact parity with the f32 reference is required.
    """
    T, B, C_in = x.shape
    H = params["W_hh"].shape[1]
    G = 4 * H
    O = params["conv2_w"].shape[0]
    eps = 1e-5
    O_pad = pl.cdiv(O, 128) * 128                              # lane-dense output width

    # --- wrapper-side folding (done once, all tiny) -------------------------------------
    wih_t = params["W_ih"].T.astype(matmul_dtype)              # (C_in, 4H)
    whh_t = params["W_hh"].T.astype(matmul_dtype)              # (H, 4H)
    b_lstm = (params["b_ih"] + params["b_hh"]).astype(jnp.float32)

    bn_scale = params["bn_gamma"] / jnp.sqrt(params["bn_var"] + eps)
    bn_shift = params["bn_beta"] - params["bn_mean"] * bn_scale
    # Fold conv1 bias + BatchNorm into the conv1 weight/bias (1x1 conv == dense projection).
    w1 = (params["conv1_w"][:, :, 0].T * bn_scale[None, :]).astype(matmul_dtype)   # (H, H)
    b1 = (params["conv1_b"] * bn_scale + bn_shift).astype(jnp.float32)             # (H,)
    # Zero-pad conv2 to a 128-lane-multiple output width; padded columns are sliced off after.
    w2 = params["conv2_w"][:, :, 0].T                                              # (H, O)
    w2p = jnp.zeros((H, O_pad), jnp.float32).at[:, :O].set(w2).astype(matmul_dtype)
    b2p = jnp.zeros((O_pad,), jnp.float32).at[:O].set(params["conv2_b"])

    # Pack the small per-channel vectors into one lane-dense slab => one DMA instead of several.
    P = pl.cdiv(max(G, H, O_pad), 128) * 128
    bias_slab = jnp.zeros((3, P), jnp.float32)
    bias_slab = bias_slab.at[0, :G].set(b_lstm)
    bias_slab = bias_slab.at[1, :H].set(b1)
    bias_slab = bias_slab.at[2, :O_pad].set(b2p)

    kernel = functools.partial(_fused_kernel, T=T, B=B, H=H, O_pad=O_pad)
    out = pl.pallas_call(
        kernel,
        out_shape=jax.ShapeDtypeStruct((B, O_pad), jnp.float32),
        grid_spec=pltpu.PrefetchScalarGridSpec(
            num_scalar_prefetch=0,
            grid=(1,),                                          # whole batch in one step
            in_specs=[
                pl.BlockSpec((T, B, C_in), lambda i: (0, 0, 0)),   # x, original seq-first layout
                pl.BlockSpec((C_in, G), lambda i: (0, 0)),         # W_ih^T
                pl.BlockSpec((H, G), lambda i: (0, 0)),            # W_hh^T
                pl.BlockSpec((H, H), lambda i: (0, 0)),            # conv1 weight (BN folded)
                pl.BlockSpec((H, O_pad), lambda i: (0, 0)),        # conv2 weight (lane-padded)
                pl.BlockSpec((3, P), lambda i: (0, 0)),            # packed bias slab
            ],
            out_specs=pl.BlockSpec((B, O_pad), lambda i: (0, 0)),
            scratch_shapes=[pltpu.VMEM((T, B, G), jnp.float32)],   # staged input projections
        ),
        compiler_params=pltpu.CompilerParams(dimension_semantics=("arbitrary",)),
    )(x.astype(matmul_dtype), wih_t, whh_t, w1, w2p, bias_slab)

    # TODO(synk): for very large B, tile the batch over a "parallel" grid axis (>=128 rows/core).
    return out[:, :O][:, None, :]                               # (B, 1, O) == permute(0, 2, 1)


# ----------------------------------------------------------------------------
# Deterministic synthetic parameters (PyTorch-format shapes)
# ----------------------------------------------------------------------------
def init_params(key, input_channels, hidden_size, output_size, kernel_size=1):
    ks = jax.random.split(key, 12)
    bd = 1.0 / jnp.sqrt(float(hidden_size))
    cb = 1.0 / jnp.sqrt(float(hidden_size * kernel_size))
    return dict(
        W_ih=jax.random.uniform(ks[0], (4 * hidden_size, input_channels), jnp.float32, -bd, bd),
        W_hh=jax.random.uniform(ks[1], (4 * hidden_size, hidden_size), jnp.float32, -bd, bd),
        b_ih=jax.random.uniform(ks[2], (4 * hidden_size,), jnp.float32, -bd, bd),
        b_hh=jax.random.uniform(ks[3], (4 * hidden_size,), jnp.float32, -bd, bd),
        conv1_w=jax.random.uniform(ks[4], (hidden_size, hidden_size, kernel_size), jnp.float32, -cb, cb),
        conv1_b=jax.random.uniform(ks[5], (hidden_size,), jnp.float32, -cb, cb),
        bn_gamma=jax.random.uniform(ks[6], (hidden_size,), jnp.float32, 0.5, 1.5),
        bn_beta=jax.random.uniform(ks[7], (hidden_size,), jnp.float32, -0.5, 0.5),
        bn_mean=jax.random.uniform(ks[8], (hidden_size,), jnp.float32, -0.5, 0.5),
        bn_var=jax.random.uniform(ks[9], (hidden_size,), jnp.float32, 0.5, 1.5),
        conv2_w=jax.random.uniform(ks[10], (output_size, hidden_size, kernel_size), jnp.float32, -cb, cb),
        conv2_b=jax.random.uniform(ks[11], (output_size,), jnp.float32, -cb, cb),
    )


# ----------------------------------------------------------------------------
# Pure-JAX reference for verification
# ----------------------------------------------------------------------------
def forward_ref(params, x):
    T, B, _ = x.shape
    H = params["W_hh"].shape[1]
    eps = 1e-5
    h = jnp.zeros((B, H), jnp.float32)
    c = jnp.zeros((B, H), jnp.float32)
    for t in range(T):
        gates = x[t] @ params["W_ih"].T + h @ params["W_hh"].T + params["b_ih"] + params["b_hh"]
        i_g = jax.nn.sigmoid(gates[:, 0 * H:1 * H])
        f_g = jax.nn.sigmoid(gates[:, 1 * H:2 * H])
        g_g = jnp.tanh(gates[:, 2 * H:3 * H])
        o_g = jax.nn.sigmoid(gates[:, 3 * H:4 * H])
        c = f_g * c + i_g * g_g
        h = o_g * jnp.tanh(c)
    # decoder on final hidden state, (B, H, 1) channel layout, kernel_size=1
    y = h @ params["conv1_w"][:, :, 0].T + params["conv1_b"]
    y = (y - params["bn_mean"]) / jnp.sqrt(params["bn_var"] + eps) * params["bn_gamma"] + params["bn_beta"]
    y = jnp.maximum(y, 0.0)
    y = y @ params["conv2_w"][:, :, 0].T + params["conv2_b"]
    return y[:, None, :]                                        # (B, 1, O)


# ----------------------------------------------------------------------------
if __name__ == "__main__":
    key = jax.random.PRNGKey(0)
    k_param, k_x = jax.random.split(key)

    T, B = 8, 2                        # seq len, batch
    C_IN, H, O, K = 8, 32, 16, 1       # input_channels, hidden_size, output_size, kernel_size

    params = init_params(k_param, C_IN, H, O, K)
    x = jax.random.normal(k_x, (T, B, C_IN), dtype=jnp.float32)

    out = jax.block_until_ready(jax.jit(forward_pallas)(params, x))
    ref = jax.block_until_ready(forward_ref(params, x))

    assert out.shape == (B, 1, O), out.shape
    assert jnp.allclose(out, ref, atol=5e-4, rtol=5e-4), "mismatch vs reference"

    print("KERNEL_OK")
</pallas_src>

<mosaic_0001>
module attributes {stable_mosaic.version = 11 : i64} {
  func.func @_fused_kernel(%arg0: i32, %arg1: memref<8x2x8xf32, #tpu.memory_space<vmem>>, %arg2: memref<8x128xf32, #tpu.memory_space<vmem>>, %arg3: memref<32x128xf32, #tpu.memory_space<vmem>>, %arg4: memref<32x32xf32, #tpu.memory_space<vmem>>, %arg5: memref<32x128xf32, #tpu.memory_space<vmem>>, %arg6: memref<3x128xf32, #tpu.memory_space<vmem>>, %arg7: memref<2x128xf32, #tpu.memory_space<vmem>>, %arg8: memref<8x2x128xf32, #tpu.memory_space<vmem>>) attributes {dimension_semantics = [#tpu.dimension_semantics<arbitrary>], iteration_bounds = array<i64: 1>, scalar_prefetch = 0 : i64, scratch_operands = 1 : i64, tpu.core_type = #tpu.core_type<tc>, window_params = [{pipeline_mode = #tpu.pipeline_mode<synchronous>, transform_indices = @transform_0, window_bounds = array<i64: 8, 2, 8>}, {pipeline_mode = #tpu.pipeline_mode<synchronous>, transform_indices = @transform_1, window_bounds = array<i64: 8, 128>}, {pipeline_mode = #tpu.pipeline_mode<synchronous>, transform_indices = @transform_2, window_bounds = array<i64: 32, 128>}, {pipeline_mode = #tpu.pipeline_mode<synchronous>, transform_indices = @transform_3, window_bounds = array<i64: 32, 32>}, {pipeline_mode = #tpu.pipeline_mode<synchronous>, transform_indices = @transform_4, window_bounds = array<i64: 32, 128>}, {pipeline_mode = #tpu.pipeline_mode<synchronous>, transform_indices = @transform_5, window_bounds = array<i64: 3, 128>}, {pipeline_mode = #tpu.pipeline_mode<synchronous>, transform_indices = @transform_6, window_bounds = array<i64: 2, 128>}]} {
    %c0 = arith.constant 0 : index
    %c0_0 = arith.constant 0 : index
    %0 = vector.load %arg2[%c0, %c0_0] : memref<8x128xf32, #tpu.memory_space<vmem>>, vector<8x128xf32>
    %c0_1 = arith.constant 0 : index
    %c0_2 = arith.constant 0 : index
    %1 = vector.load %arg3[%c0_1, %c0_2] : memref<32x128xf32, #tpu.memory_space<vmem>>, vector<32x128xf32>
    %c0_3 = arith.constant 0 : index
    %c0_4 = arith.constant 0 : index
    %2 = vector.load %arg4[%c0_3, %c0_4] : memref<32x32xf32, #tpu.memory_space<vmem>>, vector<32x32xf32>
    %c0_5 = arith.constant 0 : index
    %c0_6 = arith.constant 0 : index
    %3 = vector.load %arg5[%c0_5, %c0_6] : memref<32x128xf32, #tpu.memory_space<vmem>>, vector<32x128xf32>
    %c0_7 = arith.constant 0 : index
    %c0_8 = arith.constant 0 : index
    %4 = vector.load %arg6[%c0_7, %c0_8] : memref<3x128xf32, #tpu.memory_space<vmem>>, vector<3x128xf32>
    %5 = vector.extract_strided_slice %4 {offsets = [0, 0], sizes = [1, 128], strides = [1, 1]} : vector<3x128xf32> to vector<1x128xf32>
    %6 = vector.extract_strided_slice %4 {offsets = [1, 0], sizes = [1, 32], strides = [1, 1]} : vector<3x128xf32> to vector<1x32xf32>
    %7 = vector.extract_strided_slice %4 {offsets = [2, 0], sizes = [1, 128], strides = [1, 1]} : vector<3x128xf32> to vector<1x128xf32>
    %c0_i32 = arith.constant 0 : i32
    %8 = arith.index_cast %c0_i32 : i32 to index
    %c0_9 = arith.constant 0 : index
    %c0_10 = arith.constant 0 : index
    %9 = vector.load %arg1[%8, %c0_9, %c0_10] : memref<8x2x8xf32, #tpu.memory_space<vmem>>, vector<1x2x8xf32>
    %10 = vector.shape_cast %9 : vector<1x2x8xf32> to vector<2x8xf32>
    %cst = arith.constant dense<0.000000e+00> : vector<2x128xf32>
    %11 = tpu.matmul %10, %0, %cst {dimension_numbers = #tpu.dot_dimension_numbers<[1], [0], [0], [1], [0, 0, 1, 1], [], []>} : vector<2x8xf32>, vector<8x128xf32>, vector<2x128xf32> -> vector<2x128xf32>
    %12 = vector.broadcast %5 : vector<1x128xf32> to vector<2x128xf32>
    %13 = arith.addf %11, %12 : vector<2x128xf32>
    %14 = arith.index_cast %c0_i32 : i32 to index
    %c0_11 = arith.constant 0 : index
    %c0_12 = arith.constant 0 : index
    %15 = vector.load %arg8[%14, %c0_11, %c0_12] : memref<8x2x128xf32, #tpu.memory_space<vmem>>, vector<1x2x128xf32>
    %16 = vector.shape_cast %15 : vector<1x2x128xf32> to vector<2x128xf32>
    %17 = vector.shape_cast %13 : vector<2x128xf32> to vector<1x2x128xf32>
    tpu.vector_store %arg8[%14, %c0_11, %c0_12], %17 {strides = array<i32>} : memref<8x2x128xf32, #tpu.memory_space<vmem>>, vector<1x2x128xf32>,
    %c1_i32 = arith.constant 1 : i32
    %18 = arith.index_cast %c1_i32 : i32 to index
    %c0_13 = arith.constant 0 : index
    %c0_14 = arith.constant 0 : index
    %19 = vector.load %arg1[%18, %c0_13, %c0_14] : memref<8x2x8xf32, #tpu.memory_space<vmem>>, vector<1x2x8xf32>
    %20 = vector.shape_cast %19 : vector<1x2x8xf32> to vector<2x8xf32>
    %cst_15 = arith.constant dense<0.000000e+00> : vector<2x128xf32>
    %21 = tpu.matmul %20, %0, %cst_15 {dimension_numbers = #tpu.dot_dimension_numbers<[1], [0], [0], [1], [0, 0, 1, 1], [], []>} : vector<2x8xf32>, vector<8x128xf32>, vector<2x128xf32> -> vector<2x128xf32>
    %22 = vector.broadcast %5 : vector<1x128xf32> to vector<2x128xf32>
    %23 = arith.addf %21, %22 : vector<2x128xf32>
    %24 = arith.index_cast %c1_i32 : i32 to index
    %c0_16 = arith.constant 0 : index
    %c0_17 = arith.constant 0 : index
    %25 = vector.load %arg8[%24, %c0_16, %c0_17] : memref<8x2x128xf32, #tpu.memory_space<vmem>>, vector<1x2x128xf32>
    %26 = vector.shape_cast %25 : vector<1x2x128xf32> to vector<2x128xf32>
    %27 = vector.shape_cast %23 : vector<2x128xf32> to vector<1x2x128xf32>
    tpu.vector_store %arg8[%24, %c0_16, %c0_17], %27 {strides = array<i32>} : memref<8x2x128xf32, #tpu.memory_space<vmem>>, vector<1x2x128xf32>,
    %c2_i32 = arith.constant 2 : i32
    %28 = arith.index_cast %c2_i32 : i32 to index
    %c0_18 = arith.constant 0 : index
    %c0_19 = arith.constant 0 : index
    %29 = vector.load %arg1[%28, %c0_18, %c0_19] : memref<8x2x8xf32, #tpu.memory_space<vmem>>, vector<1x2x8xf32>
    %30 = vector.shape_cast %29 : vector<1x2x8xf32> to vector<2x8xf32>
    %cst_20 = arith.constant dense<0.000000e+00> : vector<2x128xf32>
    %31 = tpu.matmul %30, %0, %cst_20 {dimension_numbers = #tpu.dot_dimension_numbers<[1], [0], [0], [1], [0, 0, 1, 1], [], []>} : vector<2x8xf32>, vector<8x128xf32>, vector<2x128xf32> -> vector<2x128xf32>
    %32 = vector.broadcast %5 : vector<1x128xf32> to vector<2x128xf32>
    %33 = arith.addf %31, %32 : vector<2x128xf32>
    %34 = arith.index_cast %c2_i32 : i32 to index
    %c0_21 = arith.constant 0 : index
    %c0_22 = arith.constant 0 : index
    %35 = vector.load %arg8[%34, %c0_21, %c0_22] : memref<8x2x128xf32, #tpu.memory_space<vmem>>, vector<1x2x128xf32>
    %36 = vector.shape_cast %35 : vector<1x2x128xf32> to vector<2x128xf32>
    %37 = vector.shape_cast %33 : vector<2x128xf32> to vector<1x2x128xf32>
    tpu.vector_store %arg8[%34, %c0_21, %c0_22], %37 {strides = array<i32>} : memref<8x2x128xf32, #tpu.memory_space<vmem>>, vector<1x2x128xf32>,
    %c3_i32 = arith.constant 3 : i32
    %38 = arith.index_cast %c3_i32 : i32 to index
    %c0_23 = arith.constant 0 : index
    %c0_24 = arith.constant 0 : index
    %39 = vector.load %arg1[%38, %c0_23, %c0_24] : memref<8x2x8xf32, #tpu.memory_space<vmem>>, vector<1x2x8xf32>
    %40 = vector.shape_cast %39 : vector<1x2x8xf32> to vector<2x8xf32>
    %cst_25 = arith.constant dense<0.000000e+00> : vector<2x128xf32>
    %41 = tpu.matmul %40, %0, %cst_25 {dimension_numbers = #tpu.dot_dimension_numbers<[1], [0], [0], [1], [0, 0, 1, 1], [], []>} : vector<2x8xf32>, vector<8x128xf32>, vector<2x128xf32> -> vector<2x128xf32>
    %42 = vector.broadcast %5 : vector<1x128xf32> to vector<2x128xf32>
    %43 = arith.addf %41, %42 : vector<2x128xf32>
    %44 = arith.index_cast %c3_i32 : i32 to index
    %c0_26 = arith.constant 0 : index
    %c0_27 = arith.constant 0 : index
    %45 = vector.load %arg8[%44, %c0_26, %c0_27] : memref<8x2x128xf32, #tpu.memory_space<vmem>>, vector<1x2x128xf32>
    %46 = vector.shape_cast %45 : vector<1x2x128xf32> to vector<2x128xf32>
    %47 = vector.shape_cast %43 : vector<2x128xf32> to vector<1x2x128xf32>
    tpu.vector_store %arg8[%44, %c0_26, %c0_27], %47 {strides = array<i32>} : memref<8x2x128xf32, #tpu.memory_space<vmem>>, vector<1x2x128xf32>,
    %c4_i32 = arith.constant 4 : i32
    %48 = arith.index_cast %c4_i32 : i32 to index
    %c0_28 = arith.constant 0 : index
    %c0_29 = arith.constant 0 : index
    %49 = vector.load %arg1[%48, %c0_28, %c0_29] : memref<8x2x8xf32, #tpu.memory_space<vmem>>, vector<1x2x8xf32>
    %50 = vector.shape_cast %49 : vector<1x2x8xf32> to vector<2x8xf32>
    %cst_30 = arith.constant dense<0.000000e+00> : vector<2x128xf32>
    %51 = tpu.matmul %50, %0, %cst_30 {dimension_numbers = #tpu.dot_dimension_numbers<[1], [0], [0], [1], [0, 0, 1, 1], [], []>} : vector<2x8xf32>, vector<8x128xf32>, vector<2x128xf32> -> vector<2x128xf32>
    %52 = vector.broadcast %5 : vector<1x128xf32> to vector<2x128xf32>
    %53 = arith.addf %51, %52 : vector<2x128xf32>
    %54 = arith.index_cast %c4_i32 : i32 to index
    %c0_31 = arith.constant 0 : index
    %c0_32 = arith.constant 0 : index
    %55 = vector.load %arg8[%54, %c0_31, %c0_32] : memref<8x2x128xf32, #tpu.memory_space<vmem>>, vector<1x2x128xf32>
    %56 = vector.shape_cast %55 : vector<1x2x128xf32> to vector<2x128xf32>
    %57 = vector.shape_cast %53 : vector<2x128xf32> to vector<1x2x128xf32>
    tpu.vector_store %arg8[%54, %c0_31, %c0_32], %57 {strides = array<i32>} : memref<8x2x128xf32, #tpu.memory_space<vmem>>, vector<1x2x128xf32>,
    %c5_i32 = arith.constant 5 : i32
    %58 = arith.index_cast %c5_i32 : i32 to index
    %c0_33 = arith.constant 0 : index
    %c0_34 = arith.constant 0 : index
    %59 = vector.load %arg1[%58, %c0_33, %c0_34] : memref<8x2x8xf32, #tpu.memory_space<vmem>>, vector<1x2x8xf32>
    %60 = vector.shape_cast %59 : vector<1x2x8xf32> to vector<2x8xf32>
    %cst_35 = arith.constant dense<0.000000e+00> : vector<2x128xf32>
    %61 = tpu.matmul %60, %0, %cst_35 {dimension_numbers = #tpu.dot_dimension_numbers<[1], [0], [0], [1], [0, 0, 1, 1], [], []>} : vector<2x8xf32>, vector<8x128xf32>, vector<2x128xf32> -> vector<2x128xf32>
    %62 = vector.broadcast %5 : vector<1x128xf32> to vector<2x128xf32>
    %63 = arith.addf %61, %62 : vector<2x128xf32>
    %64 = arith.index_cast %c5_i32 : i32 to index
    %c0_36 = arith.constant 0 : index
    %c0_37 = arith.constant 0 : index
    %65 = vector.load %arg8[%64, %c0_36, %c0_37] : memref<8x2x128xf32, #tpu.memory_space<vmem>>, vector<1x2x128xf32>
    %66 = vector.shape_cast %65 : vector<1x2x128xf32> to vector<2x128xf32>
    %67 = vector.shape_cast %63 : vector<2x128xf32> to vector<1x2x128xf32>
    tpu.vector_store %arg8[%64, %c0_36, %c0_37], %67 {strides = array<i32>} : memref<8x2x128xf32, #tpu.memory_space<vmem>>, vector<1x2x128xf32>,
    %c6_i32 = arith.constant 6 : i32
    %68 = arith.index_cast %c6_i32 : i32 to index
    %c0_38 = arith.constant 0 : index
    %c0_39 = arith.constant 0 : index
    %69 = vector.load %arg1[%68, %c0_38, %c0_39] : memref<8x2x8xf32, #tpu.memory_space<vmem>>, vector<1x2x8xf32>
    %70 = vector.shape_cast %69 : vector<1x2x8xf32> to vector<2x8xf32>
    %cst_40 = arith.constant dense<0.000000e+00> : vector<2x128xf32>
    %71 = tpu.matmul %70, %0, %cst_40 {dimension_numbers = #tpu.dot_dimension_numbers<[1], [0], [0], [1], [0, 0, 1, 1], [], []>} : vector<2x8xf32>, vector<8x128xf32>, vector<2x128xf32> -> vector<2x128xf32>
    %72 = vector.broadcast %5 : vector<1x128xf32> to vector<2x128xf32>
    %73 = arith.addf %71, %72 : vector<2x128xf32>
    %74 = arith.index_cast %c6_i32 : i32 to index
    %c0_41 = arith.constant 0 : index
    %c0_42 = arith.constant 0 : index
    %75 = vector.load %arg8[%74, %c0_41, %c0_42] : memref<8x2x128xf32, #tpu.memory_space<vmem>>, vector<1x2x128xf32>
    %76 = vector.shape_cast %75 : vector<1x2x128xf32> to vector<2x128xf32>
    %77 = vector.shape_cast %73 : vector<2x128xf32> to vector<1x2x128xf32>
    tpu.vector_store %arg8[%74, %c0_41, %c0_42], %77 {strides = array<i32>} : memref<8x2x128xf32, #tpu.memory_space<vmem>>, vector<1x2x128xf32>,
    %c7_i32 = arith.constant 7 : i32
    %78 = arith.index_cast %c7_i32 : i32 to index
    %c0_43 = arith.constant 0 : index
    %c0_44 = arith.constant 0 : index
    %79 = vector.load %arg1[%78, %c0_43, %c0_44] : memref<8x2x8xf32, #tpu.memory_space<vmem>>, vector<1x2x8xf32>
    %80 = vector.shape_cast %79 : vector<1x2x8xf32> to vector<2x8xf32>
    %cst_45 = arith.constant dense<0.000000e+00> : vector<2x128xf32>
    %81 = tpu.matmul %80, %0, %cst_45 {dimension_numbers = #tpu.dot_dimension_numbers<[1], [0], [0], [1], [0, 0, 1, 1], [], []>} : vector<2x8xf32>, vector<8x128xf32>, vector<2x128xf32> -> vector<2x128xf32>
    %82 = vector.broadcast %5 : vector<1x128xf32> to vector<2x128xf32>
    %83 = arith.addf %81, %82 : vector<2x128xf32>
    %84 = arith.index_cast %c7_i32 : i32 to index
    %c0_46 = arith.constant 0 : index
    %c0_47 = arith.constant 0 : index
    %85 = vector.load %arg8[%84, %c0_46, %c0_47] : memref<8x2x128xf32, #tpu.memory_space<vmem>>, vector<1x2x128xf32>
    %86 = vector.shape_cast %85 : vector<1x2x128xf32> to vector<2x128xf32>
    %87 = vector.shape_cast %83 : vector<2x128xf32> to vector<1x2x128xf32>
    tpu.vector_store %arg8[%84, %c0_46, %c0_47], %87 {strides = array<i32>} : memref<8x2x128xf32, #tpu.memory_space<vmem>>, vector<1x2x128xf32>,
    %c8_i32 = arith.constant 8 : i32
    %cst_48 = arith.constant 0.000000e+00 : f32
    %88 = vector.broadcast %cst_48 : f32 to vector<2x32xf32>
    %cst_49 = arith.constant 0.000000e+00 : f32
    %89 = vector.broadcast %cst_49 : f32 to vector<2x32xf32>
    %c0_i32_50 = arith.constant 0 : i32
    %90 = arith.index_cast %c0_i32_50 : i32 to index
    %c0_51 = arith.constant 0 : index
    %c0_52 = arith.constant 0 : index
    %91 = vector.load %arg8[%90, %c0_51, %c0_52] : memref<8x2x128xf32, #tpu.memory_space<vmem>>, vector<1x2x128xf32>
    %92 = vector.shape_cast %91 : vector<1x2x128xf32> to vector<2x128xf32>
    %cst_53 = arith.constant dense<0.000000e+00> : vector<2x128xf32>
    %93 = tpu.matmul %88, %1, %cst_53 {dimension_numbers = #tpu.dot_dimension_numbers<[1], [0], [0], [1], [0, 0, 1, 1], [], []>} : vector<2x32xf32>, vector<32x128xf32>, vector<2x128xf32> -> vector<2x128xf32>
    %94 = arith.addf %92, %93 : vector<2x128xf32>
    %95 = vector.extract_strided_slice %94 {offsets = [0, 0], sizes = [2, 32], strides = [1, 1]} : vector<2x128xf32> to vector<2x32xf32>
    %96 = arith.negf %95 : vector<2x32xf32>
    %97 = math.exp %96 : vector<2x32xf32>
    %cst_54 = arith.constant 1.000000e+00 : f32
    %98 = vector.broadcast %cst_54 : f32 to vector<2x32xf32>
    %99 = arith.addf %98, %97 : vector<2x32xf32>
    %100 = arith.divf %98, %99 : vector<2x32xf32>
    %101 = vector.extract_strided_slice %94 {offsets = [0, 32], sizes = [2, 32], strides = [1, 1]} : vector<2x128xf32> to vector<2x32xf32>
    %102 = arith.negf %101 : vector<2x32xf32>
    %103 = math.exp %102 : vector<2x32xf32>
    %cst_55 = arith.constant 1.000000e+00 : f32
    %104 = vector.broadcast %cst_55 : f32 to vector<2x32xf32>
    %105 = arith.addf %104, %103 : vector<2x32xf32>
    %106 = arith.divf %104, %105 : vector<2x32xf32>
    %107 = vector.extract_strided_slice %94 {offsets = [0, 64], sizes = [2, 32], strides = [1, 1]} : vector<2x128xf32> to vector<2x32xf32>
    %108 = math.tanh %107 : vector<2x32xf32>
    %109 = vector.extract_strided_slice %94 {offsets = [0, 96], sizes = [2, 32], strides = [1, 1]} : vector<2x128xf32> to vector<2x32xf32>
    %110 = arith.negf %109 : vector<2x32xf32>
    %111 = math.exp %110 : vector<2x32xf32>
    %cst_56 = arith.constant 1.000000e+00 : f32
    %112 = vector.broadcast %cst_56 : f32 to vector<2x32xf32>
    %113 = arith.addf %112, %111 : vector<2x32xf32>
    %114 = arith.divf %112, %113 : vector<2x32xf32>
    %115 = arith.mulf %106, %89 : vector<2x32xf32>
    %116 = arith.mulf %100, %108 : vector<2x32xf32>
    %117 = arith.addf %115, %116 : vector<2x32xf32>
    %118 = math.tanh %117 : vector<2x32xf32>
    %119 = arith.mulf %114, %118 : vector<2x32xf32>
    %c1_i32_57 = arith.constant 1 : i32
    %120 = arith.index_cast %c1_i32_57 : i32 to index
    %c0_58 = arith.constant 0 : index
    %c0_59 = arith.constant 0 : index
    %121 = vector.load %arg8[%120, %c0_58, %c0_59] : memref<8x2x128xf32, #tpu.memory_space<vmem>>, vector<1x2x128xf32>
    %122 = vector.shape_cast %121 : vector<1x2x128xf32> to vector<2x128xf32>
    %cst_60 = arith.constant dense<0.000000e+00> : vector<2x128xf32>
    %123 = tpu.matmul %119, %1, %cst_60 {dimension_numbers = #tpu.dot_dimension_numbers<[1], [0], [0], [1], [0, 0, 1, 1], [], []>} : vector<2x32xf32>, vector<32x128xf32>, vector<2x128xf32> -> vector<2x128xf32>
    %124 = arith.addf %122, %123 : vector<2x128xf32>
    %125 = vector.extract_strided_slice %124 {offsets = [0, 0], sizes = [2, 32], strides = [1, 1]} : vector<2x128xf32> to vector<2x32xf32>
    %126 = arith.negf %125 : vector<2x32xf32>
    %127 = math.exp %126 : vector<2x32xf32>
    %cst_61 = arith.constant 1.000000e+00 : f32
    %128 = vector.broadcast %cst_61 : f32 to vector<2x32xf32>
    %129 = arith.addf %128, %127 : vector<2x32xf32>
    %130 = arith.divf %128, %129 : vector<2x32xf32>
    %131 = vector.extract_strided_slice %124 {offsets = [0, 32], sizes = [2, 32], strides = [1, 1]} : vector<2x128xf32> to vector<2x32xf32>
    %132 = arith.negf %131 : vector<2x32xf32>
    %133 = math.exp %132 : vector<2x32xf32>
    %cst_62 = arith.constant 1.000000e+00 : f32
    %134 = vector.broadcast %cst_62 : f32 to vector<2x32xf32>
    %135 = arith.addf %134, %133 : vector<2x32xf32>
    %136 = arith.divf %134, %135 : vector<2x32xf32>
    %137 = vector.extract_strided_slice %124 {offsets = [0, 64], sizes = [2, 32], strides = [1, 1]} : vector<2x128xf32> to vector<2x32xf32>
    %138 = math.tanh %137 : vector<2x32xf32>
    %139 = vector.extract_strided_slice %124 {offsets = [0, 96], sizes = [2, 32], strides = [1, 1]} : vector<2x128xf32> to vector<2x32xf32>
    %140 = arith.negf %139 : vector<2x32xf32>
    %141 = math.exp %140 : vector<2x32xf32>
    %cst_63 = arith.constant 1.000000e+00 : f32
    %142 = vector.broadcast %cst_63 : f32 to vector<2x32xf32>
    %143 = arith.addf %142, %141 : vector<2x32xf32>
    %144 = arith.divf %142, %143 : vector<2x32xf32>
    %145 = arith.mulf %136, %117 : vector<2x32xf32>
    %146 = arith.mulf %130, %138 : vector<2x32xf32>
    %147 = arith.addf %145, %146 : vector<2x32xf32>
    %148 = math.tanh %147 : vector<2x32xf32>
    %149 = arith.mulf %144, %148 : vector<2x32xf32>
    %c2_i32_64 = arith.constant 2 : i32
    %150 = arith.index_cast %c2_i32_64 : i32 to index
    %c0_65 = arith.constant 0 : index
    %c0_66 = arith.constant 0 : index
    %151 = vector.load %arg8[%150, %c0_65, %c0_66] : memref<8x2x128xf32, #tpu.memory_space<vmem>>, vector<1x2x128xf32>
    %152 = vector.shape_cast %151 : vector<1x2x128xf32> to vector<2x128xf32>
    %cst_67 = arith.constant dense<0.000000e+00> : vector<2x128xf32>
    %153 = tpu.matmul %149, %1, %cst_67 {dimension_numbers = #tpu.dot_dimension_numbers<[1], [0], [0], [1], [0, 0, 1, 1], [], []>} : vector<2x32xf32>, vector<32x128xf32>, vector<2x128xf32> -> vector<2x128xf32>
    %154 = arith.addf %152, %153 : vector<2x128xf32>
    %155 = vector.extract_strided_slice %154 {offsets = [0, 0], sizes = [2, 32], strides = [1, 1]} : vector<2x128xf32> to vector<2x32xf32>
    %156 = arith.negf %155 : vector<2x32xf32>
    %157 = math.exp %156 : vector<2x32xf32>
    %cst_68 = arith.constant 1.000000e+00 : f32
    %158 = vector.broadcast %cst_68 : f32 to vector<2x32xf32>
    %159 = arith.addf %158, %157 : vector<2x32xf32>
    %160 = arith.divf %158, %159 : vector<2x32xf32>
    %161 = vector.extract_strided_slice %154 {offsets = [0, 32], sizes = [2, 32], strides = [1, 1]} : vector<2x128xf32> to vector<2x32xf32>
    %162 = arith.negf %161 : vector<2x32xf32>
    %163 = math.exp %162 : vector<2x32xf32>
    %cst_69 = arith.constant 1.000000e+00 : f32
    %164 = vector.broadcast %cst_69 : f32 to vector<2x32xf32>
    %165 = arith.addf %164, %163 : vector<2x32xf32>
    %166 = arith.divf %164, %165 : vector<2x32xf32>
    %167 = vector.extract_strided_slice %154 {offsets = [0, 64], sizes = [2, 32], strides = [1, 1]} : vector<2x128xf32> to vector<2x32xf32>
    %168 = math.tanh %167 : vector<2x32xf32>
    %169 = vector.extract_strided_slice %154 {offsets = [0, 96], sizes = [2, 32], strides = [1, 1]} : vector<2x128xf32> to vector<2x32xf32>
    %170 = arith.negf %169 : vector<2x32xf32>
    %171 = math.exp %170 : vector<2x32xf32>
    %cst_70 = arith.constant 1.000000e+00 : f32
    %172 = vector.broadcast %cst_70 : f32 to vector<2x32xf32>
    %173 = arith.addf %172, %171 : vector<2x32xf32>
    %174 = arith.divf %172, %173 : vector<2x32xf32>
    %175 = arith.mulf %166, %147 : vector<2x32xf32>
    %176 = arith.mulf %160, %168 : vector<2x32xf32>
    %177 = arith.addf %175, %176 : vector<2x32xf32>
    %178 = math.tanh %177 : vector<2x32xf32>
    %179 = arith.mulf %174, %178 : vector<2x32xf32>
    %c3_i32_71 = arith.constant 3 : i32
    %180 = arith.index_cast %c3_i32_71 : i32 to index
    %c0_72 = arith.constant 0 : index
    %c0_73 = arith.constant 0 : index
    %181 = vector.load %arg8[%180, %c0_72, %c0_73] : memref<8x2x128xf32, #tpu.memory_space<vmem>>, vector<1x2x128xf32>
    %182 = vector.shape_cast %181 : vector<1x2x128xf32> to vector<2x128xf32>
    %cst_74 = arith.constant dense<0.000000e+00> : vector<2x128xf32>
    %183 = tpu.matmul %179, %1, %cst_74 {dimension_numbers = #tpu.dot_dimension_numbers<[1], [0], [0], [1], [0, 0, 1, 1], [], []>} : vector<2x32xf32>, vector<32x128xf32>, vector<2x128xf32> -> vector<2x128xf32>
    %184 = arith.addf %182, %183 : vector<2x128xf32>
    %185 = vector.extract_strided_slice %184 {offsets = [0, 0], sizes = [2, 32], strides = [1, 1]} : vector<2x128xf32> to vector<2x32xf32>
    %186 = arith.negf %185 : vector<2x32xf32>
    %187 = math.exp %186 : vector<2x32xf32>
    %cst_75 = arith.constant 1.000000e+00 : f32
    %188 = vector.broadcast %cst_75 : f32 to vector<2x32xf32>
    %189 = arith.addf %188, %187 : vector<2x32xf32>
    %190 = arith.divf %188, %189 : vector<2x32xf32>
    %191 = vector.extract_strided_slice %184 {offsets = [0, 32], sizes = [2, 32], strides = [1, 1]} : vector<2x128xf32> to vector<2x32xf32>
    %192 = arith.negf %191 : vector<2x32xf32>
    %193 = math.exp %192 : vector<2x32xf32>
    %cst_76 = arith.constant 1.000000e+00 : f32
    %194 = vector.broadcast %cst_76 : f32 to vector<2x32xf32>
    %195 = arith.addf %194, %193 : vector<2x32xf32>
    %196 = arith.divf %194, %195 : vector<2x32xf32>
    %197 = vector.extract_strided_slice %184 {offsets = [0, 64], sizes = [2, 32], strides = [1, 1]} : vector<2x128xf32> to vector<2x32xf32>
    %198 = math.tanh %197 : vector<2x32xf32>
    %199 = vector.extract_strided_slice %184 {offsets = [0, 96], sizes = [2, 32], strides = [1, 1]} : vector<2x128xf32> to vector<2x32xf32>
    %200 = arith.negf %199 : vector<2x32xf32>
    %201 = math.exp %200 : vector<2x32xf32>
    %cst_77 = arith.constant 1.000000e+00 : f32
    %202 = vector.broadcast %cst_77 : f32 to vector<2x32xf32>
    %203 = arith.addf %202, %201 : vector<2x32xf32>
    %204 = arith.divf %202, %203 : vector<2x32xf32>
    %205 = arith.mulf %196, %177 : vector<2x32xf32>
    %206 = arith.mulf %190, %198 : vector<2x32xf32>
    %207 = arith.addf %205, %206 : vector<2x32xf32>
    %208 = math.tanh %207 : vector<2x32xf32>
    %209 = arith.mulf %204, %208 : vector<2x32xf32>
    %c4_i32_78 = arith.constant 4 : i32
    %210 = arith.index_cast %c4_i32_78 : i32 to index
    %c0_79 = arith.constant 0 : index
    %c0_80 = arith.constant 0 : index
    %211 = vector.load %arg8[%210, %c0_79, %c0_80] : memref<8x2x128xf32, #tpu.memory_space<vmem>>, vector<1x2x128xf32>
    %212 = vector.shape_cast %211 : vector<1x2x128xf32> to vector<2x128xf32>
    %cst_81 = arith.constant dense<0.000000e+00> : vector<2x128xf32>
    %213 = tpu.matmul %209, %1, %cst_81 {dimension_numbers = #tpu.dot_dimension_numbers<[1], [0], [0], [1], [0, 0, 1, 1], [], []>} : vector<2x32xf32>, vector<32x128xf32>, vector<2x128xf32> -> vector<2x128xf32>
    %214 = arith.addf %212, %213 : vector<2x128xf32>
    %215 = vector.extract_strided_slice %214 {offsets = [0, 0], sizes = [2, 32], strides = [1, 1]} : vector<2x128xf32> to vector<2x32xf32>
    %216 = arith.negf %215 : vector<2x32xf32>
    %217 = math.exp %216 : vector<2x32xf32>
    %cst_82 = arith.constant 1.000000e+00 : f32
    %218 = vector.broadcast %cst_82 : f32 to vector<2x32xf32>
    %219 = arith.addf %218, %217 : vector<2x32xf32>
    %220 = arith.divf %218, %219 : vector<2x32xf32>
    %221 = vector.extract_strided_slice %214 {offsets = [0, 32], sizes = [2, 32], strides = [1, 1]} : vector<2x128xf32> to vector<2x32xf32>
    %222 = arith.negf %221 : vector<2x32xf32>
    %223 = math.exp %222 : vector<2x32xf32>
    %cst_83 = arith.constant 1.000000e+00 : f32
    %224 = vector.broadcast %cst_83 : f32 to vector<2x32xf32>
    %225 = arith.addf %224, %223 : vector<2x32xf32>
    %226 = arith.divf %224, %225 : vector<2x32xf32>
    %227 = vector.extract_strided_slice %214 {offsets = [0, 64], sizes = [2, 32], strides = [1, 1]} : vector<2x128xf32> to vector<2x32xf32>
    %228 = math.tanh %227 : vector<2x32xf32>
    %229 = vector.extract_strided_slice %214 {offsets = [0, 96], sizes = [2, 32], strides = [1, 1]} : vector<2x128xf32> to vector<2x32xf32>
    %230 = arith.negf %229 : vector<2x32xf32>
    %231 = math.exp %230 : vector<2x32xf32>
    %cst_84 = arith.constant 1.000000e+00 : f32
    %232 = vector.broadcast %cst_84 : f32 to vector<2x32xf32>
    %233 = arith.addf %232, %231 : vector<2x32xf32>
    %234 = arith.divf %232, %233 : vector<2x32xf32>
    %235 = arith.mulf %226, %207 : vector<2x32xf32>
    %236 = arith.mulf %220, %228 : vector<2x32xf32>
    %237 = arith.addf %235, %236 : vector<2x32xf32>
    %238 = math.tanh %237 : vector<2x32xf32>
    %239 = arith.mulf %234, %238 : vector<2x32xf32>
    %c5_i32_85 = arith.constant 5 : i32
    %240 = arith.index_cast %c5_i32_85 : i32 to index
    %c0_86 = arith.constant 0 : index
    %c0_87 = arith.constant 0 : index
    %241 = vector.load %arg8[%240, %c0_86, %c0_87] : memref<8x2x128xf32, #tpu.memory_space<vmem>>, vector<1x2x128xf32>
    %242 = vector.shape_cast %241 : vector<1x2x128xf32> to vector<2x128xf32>
    %cst_88 = arith.constant dense<0.000000e+00> : vector<2x128xf32>
    %243 = tpu.matmul %239, %1, %cst_88 {dimension_numbers = #tpu.dot_dimension_numbers<[1], [0], [0], [1], [0, 0, 1, 1], [], []>} : vector<2x32xf32>, vector<32x128xf32>, vector<2x128xf32> -> vector<2x128xf32>
    %244 = arith.addf %242, %243 : vector<2x128xf32>
    %245 = vector.extract_strided_slice %244 {offsets = [0, 0], sizes = [2, 32], strides = [1, 1]} : vector<2x128xf32> to vector<2x32xf32>
    %246 = arith.negf %245 : vector<2x32xf32>
    %247 = math.exp %246 : vector<2x32xf32>
    %cst_89 = arith.constant 1.000000e+00 : f32
    %248 = vector.broadcast %cst_89 : f32 to vector<2x32xf32>
    %249 = arith.addf %248, %247 : vector<2x32xf32>
    %250 = arith.divf %248, %249 : vector<2x32xf32>
    %251 = vector.extract_strided_slice %244 {offsets = [0, 32], sizes = [2, 32], strides = [1, 1]} : vector<2x128xf32> to vector<2x32xf32>
    %252 = arith.negf %251 : vector<2x32xf32>
    %253 = math.exp %252 : vector<2x32xf32>
    %cst_90 = arith.constant 1.000000e+00 : f32
    %254 = vector.broadcast %cst_90 : f32 to vector<2x32xf32>
    %255 = arith.addf %254, %253 : vector<2x32xf32>
    %256 = arith.divf %254, %255 : vector<2x32xf32>
    %257 = vector.extract_strided_slice %244 {offsets = [0, 64], sizes = [2, 32], strides = [1, 1]} : vector<2x128xf32> to vector<2x32xf32>
    %258 = math.tanh %257 : vector<2x32xf32>
    %259 = vector.extract_strided_slice %244 {offsets = [0, 96], sizes = [2, 32], strides = [1, 1]} : vector<2x128xf32> to vector<2x32xf32>
    %260 = arith.negf %259 : vector<2x32xf32>
    %261 = math.exp %260 : vector<2x32xf32>
    %cst_91 = arith.constant 1.000000e+00 : f32
    %262 = vector.broadcast %cst_91 : f32 to vector<2x32xf32>
    %263 = arith.addf %262, %261 : vector<2x32xf32>
    %264 = arith.divf %262, %263 : vector<2x32xf32>
    %265 = arith.mulf %256, %237 : vector<2x32xf32>
    %266 = arith.mulf %250, %258 : vector<2x32xf32>
    %267 = arith.addf %265, %266 : vector<2x32xf32>
    %268 = math.tanh %267 : vector<2x32xf32>
    %269 = arith.mulf %264, %268 : vector<2x32xf32>
    %c6_i32_92 = arith.constant 6 : i32
    %270 = arith.index_cast %c6_i32_92 : i32 to index
    %c0_93 = arith.constant 0 : index
    %c0_94 = arith.constant 0 : index
    %271 = vector.load %arg8[%270, %c0_93, %c0_94] : memref<8x2x128xf32, #tpu.memory_space<vmem>>, vector<1x2x128xf32>
    %272 = vector.shape_cast %271 : vector<1x2x128xf32> to vector<2x128xf32>
    %cst_95 = arith.constant dense<0.000000e+00> : vector<2x128xf32>
    %273 = tpu.matmul %269, %1, %cst_95 {dimension_numbers = #tpu.dot_dimension_numbers<[1], [0], [0], [1], [0, 0, 1, 1], [], []>} : vector<2x32xf32>, vector<32x128xf32>, vector<2x128xf32> -> vector<2x128xf32>
    %274 = arith.addf %272, %273 : vector<2x128xf32>
    %275 = vector.extract_strided_slice %274 {offsets = [0, 0], sizes = [2, 32], strides = [1, 1]} : vector<2x128xf32> to vector<2x32xf32>
    %276 = arith.negf %275 : vector<2x32xf32>
    %277 = math.exp %276 : vector<2x32xf32>
    %cst_96 = arith.constant 1.000000e+00 : f32
    %278 = vector.broadcast %cst_96 : f32 to vector<2x32xf32>
    %279 = arith.addf %278, %277 : vector<2x32xf32>
    %280 = arith.divf %278, %279 : vector<2x32xf32>
    %281 = vector.extract_strided_slice %274 {offsets = [0, 32], sizes = [2, 32], strides = [1, 1]} : vector<2x128xf32> to vector<2x32xf32>
    %282 = arith.negf %281 : vector<2x32xf32>
    %283 = math.exp %282 : vector<2x32xf32>
    %cst_97 = arith.constant 1.000000e+00 : f32
    %284 = vector.broadcast %cst_97 : f32 to vector<2x32xf32>
    %285 = arith.addf %284, %283 : vector<2x32xf32>
    %286 = arith.divf %284, %285 : vector<2x32xf32>
    %287 = vector.extract_strided_slice %274 {offsets = [0, 64], sizes = [2, 32], strides = [1, 1]} : vector<2x128xf32> to vector<2x32xf32>
    %288 = math.tanh %287 : vector<2x32xf32>
    %289 = vector.extract_strided_slice %274 {offsets = [0, 96], sizes = [2, 32], strides = [1, 1]} : vector<2x128xf32> to vector<2x32xf32>
    %290 = arith.negf %289 : vector<2x32xf32>
    %291 = math.exp %290 : vector<2x32xf32>
    %cst_98 = arith.constant 1.000000e+00 : f32
    %292 = vector.broadcast %cst_98 : f32 to vector<2x32xf32>
    %293 = arith.addf %292, %291 : vector<2x32xf32>
    %294 = arith.divf %292, %293 : vector<2x32xf32>
    %295 = arith.mulf %286, %267 : vector<2x32xf32>
    %296 = arith.mulf %280, %288 : vector<2x32xf32>
    %297 = arith.addf %295, %296 : vector<2x32xf32>
    %298 = math.tanh %297 : vector<2x32xf32>
    %299 = arith.mulf %294, %298 : vector<2x32xf32>
    %c7_i32_99 = arith.constant 7 : i32
    %300 = arith.index_cast %c7_i32_99 : i32 to index
    %c0_100 = arith.constant 0 : index
    %c0_101 = arith.constant 0 : index
    %301 = vector.load %arg8[%300, %c0_100, %c0_101] : memref<8x2x128xf32, #tpu.memory_space<vmem>>, vector<1x2x128xf32>
    %302 = vector.shape_cast %301 : vector<1x2x128xf32> to vector<2x128xf32>
    %cst_102 = arith.constant dense<0.000000e+00> : vector<2x128xf32>
    %303 = tpu.matmul %299, %1, %cst_102 {dimension_numbers = #tpu.dot_dimension_numbers<[1], [0], [0], [1], [0, 0, 1, 1], [], []>} : vector<2x32xf32>, vector<32x128xf32>, vector<2x128xf32> -> vector<2x128xf32>
    %304 = arith.addf %302, %303 : vector<2x128xf32>
    %305 = vector.extract_strided_slice %304 {offsets = [0, 0], sizes = [2, 32], strides = [1, 1]} : vector<2x128xf32> to vector<2x32xf32>
    %306 = arith.negf %305 : vector<2x32xf32>
    %307 = math.exp %306 : vector<2x32xf32>
    %cst_103 = arith.constant 1.000000e+00 : f32
    %308 = vector.broadcast %cst_103 : f32 to vector<2x32xf32>
    %309 = arith.addf %308, %307 : vector<2x32xf32>
    %310 = arith.divf %308, %309 : vector<2x32xf32>
    %311 = vector.extract_strided_slice %304 {offsets = [0, 32], sizes = [2, 32], strides = [1, 1]} : vector<2x128xf32> to vector<2x32xf32>
    %312 = arith.negf %311 : vector<2x32xf32>
    %313 = math.exp %312 : vector<2x32xf32>
    %cst_104 = arith.constant 1.000000e+00 : f32
    %314 = vector.broadcast %cst_104 : f32 to vector<2x32xf32>
    %315 = arith.addf %314, %313 : vector<2x32xf32>
    %316 = arith.divf %314, %315 : vector<2x32xf32>
    %317 = vector.extract_strided_slice %304 {offsets = [0, 64], sizes = [2, 32], strides = [1, 1]} : vector<2x128xf32> to vector<2x32xf32>
    %318 = math.tanh %317 : vector<2x32xf32>
    %319 = vector.extract_strided_slice %304 {offsets = [0, 96], sizes = [2, 32], strides = [1, 1]} : vector<2x128xf32> to vector<2x32xf32>
    %320 = arith.negf %319 : vector<2x32xf32>
    %321 = math.exp %320 : vector<2x32xf32>
    %cst_105 = arith.constant 1.000000e+00 : f32
    %322 = vector.broadcast %cst_105 : f32 to vector<2x32xf32>
    %323 = arith.addf %322, %321 : vector<2x32xf32>
    %324 = arith.divf %322, %323 : vector<2x32xf32>
    %325 = arith.mulf %316, %297 : vector<2x32xf32>
    %326 = arith.mulf %310, %318 : vector<2x32xf32>
    %327 = arith.addf %325, %326 : vector<2x32xf32>
    %328 = math.tanh %327 : vector<2x32xf32>
    %329 = arith.mulf %324, %328 : vector<2x32xf32>
    %c8_i32_106 = arith.constant 8 : i32
    %cst_107 = arith.constant dense<0.000000e+00> : vector<2x32xf32>
    %330 = tpu.matmul %329, %2, %cst_107 {dimension_numbers = #tpu.dot_dimension_numbers<[1], [0], [0], [1], [0, 0, 1, 1], [], []>} : vector<2x32xf32>, vector<32x32xf32>, vector<2x32xf32> -> vector<2x32xf32>
    %331 = vector.broadcast %6 : vector<1x32xf32> to vector<2x32xf32>
    %332 = arith.addf %330, %331 : vector<2x32xf32>
    %cst_108 = arith.constant 0.000000e+00 : f32
    %333 = vector.broadcast %cst_108 : f32 to vector<2x32xf32>
    %334 = arith.maximumf %332, %333 : vector<2x32xf32>
    %cst_109 = arith.constant dense<0.000000e+00> : vector<2x128xf32>
    %335 = tpu.matmul %334, %3, %cst_109 {dimension_numbers = #tpu.dot_dimension_numbers<[1], [0], [0], [1], [0, 0, 1, 1], [], []>} : vector<2x32xf32>, vector<32x128xf32>, vector<2x128xf32> -> vector<2x128xf32>
    %336 = vector.broadcast %7 : vector<1x128xf32> to vector<2x128xf32>
    %337 = arith.addf %335, %336 : vector<2x128xf32>
    %c0_110 = arith.constant 0 : index
    %c0_111 = arith.constant 0 : index
    %338 = vector.load %arg7[%c0_110, %c0_111] : memref<2x128xf32, #tpu.memory_space<vmem>>, vector<2x128xf32>
    tpu.vector_store %arg7[%c0_110, %c0_111], %337 {strides = array<i32>} : memref<2x128xf32, #tpu.memory_space<vmem>>, vector<2x128xf32>,
    return
  }
  func.func @transform_0(%arg0: i32) -> (i32, i32, i32) {
    %c0_i32 = arith.constant 0 : i32
    %c0_i32_0 = arith.constant 0 : i32
    %c0_i32_1 = arith.constant 0 : i32
    %c0_i32_2 = arith.constant 0 : i32
    return %c0_i32, %c0_i32_0, %c0_i32_1 : i32, i32, i32
  }
  func.func @transform_1(%arg0: i32) -> (i32, i32) {
    %c0_i32 = arith.constant 0 : i32
    %c0_i32_0 = arith.constant 0 : i32
    %c0_i32_1 = arith.constant 0 : i32
    return %c0_i32, %c0_i32_0 : i32, i32
  }
  func.func @transform_2(%arg0: i32) -> (i32, i32) {
    %c0_i32 = arith.constant 0 : i32
    %c0_i32_0 = arith.constant 0 : i32
    %c0_i32_1 = arith.constant 0 : i32
    return %c0_i32, %c0_i32_0 : i32, i32
  }
  func.func @transform_3(%arg0: i32) -> (i32, i32) {
    %c0_i32 = arith.constant 0 : i32
    %c0_i32_0 = arith.constant 0 : i32
    %c0_i32_1 = arith.constant 0 : i32
    return %c0_i32, %c0_i32_0 : i32, i32
  }
  func.func @transform_4(%arg0: i32) -> (i32, i32) {
    %c0_i32 = arith.constant 0 : i32
    %c0_i32_0 = arith.constant 0 : i32
    %c0_i32_1 = arith.constant 0 : i32
    return %c0_i32, %c0_i32_0 : i32, i32
  }
  func.func @transform_5(%arg0: i32) -> (i32, i32) {
    %c0_i32 = arith.constant 0 : i32
    %c0_i32_0 = arith.constant 0 : i32
    %c0_i32_1 = arith.constant 0 : i32
    return %c0_i32, %c0_i32_0 : i32, i32
  }
  func.func @transform_6(%arg0: i32) -> (i32, i32) {
    %c0_i32 = arith.constant 0 : i32
    %c0_i32_0 = arith.constant 0 : i32
    %c0_i32_1 = arith.constant 0 : i32
    return %c0_i32, %c0_i32_0 : i32, i32
  }
}

</mosaic_0001>

<llo_original>
// kernel: forward_pallas.1
$region0: #{forward_pallas.1}
  #allocation0 [shape = 'u32[]', space=smem, size = 0x4, offset = 0x4, fixed_abs, tag = 'smem constant byte address 0x4 - core index']
  #allocation1 [shape = 'u32[144,128]{1,0:T(1,128)}', space=vmem, size = 0x12000, scoped, tag = 'internal scratch']
  #allocation2 [shape = 'f32[8,2,128]{2,1,0:T(2,128)}', space=vmem, size = 0x2000, scoped, tag = 'scratch operand']
  %s0 = inlined_call_operand.vmem [shape: f32[8,2,8], index: 0, kind: input, shape index: {}]
  %s1 = inlined_call_operand.vmem [shape: f32[8,128], index: 1, kind: input, shape index: {}]
  %s2 = inlined_call_operand.vmem [shape: f32[32,128], index: 2, kind: input, shape index: {}]
  %s3 = inlined_call_operand.vmem [shape: f32[32,32], index: 3, kind: input, shape index: {}]
  %s4 = inlined_call_operand.vmem [shape: f32[32,128], index: 4, kind: input, shape index: {}]
  %s5 = inlined_call_operand.vmem [shape: f32[3,128], index: 5, kind: input, shape index: {}]
  %s6 = inlined_call_operand.hbm [shape: f32[2,128], index: 6, kind: output, shape index: {}]
  %s7 = sld [smem:[#allocation0]]
  $region34: #{forward_pallas.1} parent=0
    _
  %s9 = ssub.s32 1, %s7
  %s10 = scalar_select 0, %s9, %s7
  $region1: #{forward_pallas.1} parent=0
    #allocation3 [shape = 'u8[1024]{0}', space=vmem, size = 0x400, scoped, tag = 'output window, operand 0, single buffered']
    #allocation4 [shape = 's32[1]{0}', space=sflag, size = 0x4, scoped, tag = 'scoped memory for forward_pallas.1']
    %11 = vsyncpa [#allocation4], 0
    // Predicated region
    $region2: #{forward_pallas.1} parent=1 // pred_check
      _
    $region3: #{forward_pallas.1} parent=1 // pred_check_branch
      %13 = sbr.rel (0) target = $region5
    $region4: #{forward_pallas.1} parent=1 // pred_region
      _
    $region5: #{forward_pallas.1} parent=1 // pred_fallthru
      _
    // Predicated region
    $region6: #{forward_pallas.1} parent=1 // pred_check
      _
    $region7: #{forward_pallas.1} parent=1 // pred_check_branch
      %15 = sbr.rel (0) target = $region9
    $region8: #{forward_pallas.1} parent=1 // pred_region
      _
    $region9: #{forward_pallas.1} parent=1 // pred_fallthru
      _
    // Predicated region
    $region10: #{forward_pallas.1} parent=1 // pred_check
      _
    $region11: #{forward_pallas.1} parent=1 // pred_check_branch
      %17 = sbr.rel (0) target = $region13
    $region12: #{forward_pallas.1} parent=1 // pred_region
      _
    $region13: #{forward_pallas.1} parent=1 // pred_fallthru
      _
    // Predicated region
    $region14: #{forward_pallas.1} parent=1 // pred_check
      _
    $region15: #{forward_pallas.1} parent=1 // pred_check_branch
      %19 = sbr.rel (0) target = $region17
    $region16: #{forward_pallas.1} parent=1 // pred_region
      _
    $region17: #{forward_pallas.1} parent=1 // pred_fallthru
      _
    // Predicated region
    $region18: #{forward_pallas.1} parent=1 // pred_check
      _
    $region19: #{forward_pallas.1} parent=1 // pred_check_branch
      %21 = sbr.rel (0) target = $region21
    $region20: #{forward_pallas.1} parent=1 // pred_region
      _
    $region21: #{forward_pallas.1} parent=1 // pred_fallthru
      _
    // Predicated region
    $region22: #{forward_pallas.1} parent=1 // pred_check
      _
    $region23: #{forward_pallas.1} parent=1 // pred_check_branch
      %23 = sbr.rel (0) target = $region25
    $region24: #{forward_pallas.1} parent=1 // pred_region
      _
    $region25: #{forward_pallas.1} parent=1 // pred_fallthru
      _
    %v24 = vld [vmem:[%s1] sm:$0xff]
    %v25 = vld [vmem:[%s2] sm:$0xff]
    %v26 = vld [vmem:[%s2 + $0x8] sm:$0xff]
    %v27 = vld [vmem:[%s2 + $0x10] sm:$0xff]
    %v28 = vld [vmem:[%s2 + $0x18] sm:$0xff]
    %v29 = vld [vmem:[%s3] sm:$0xff]
    %v30 = vld [vmem:[%s3 + $0x8] sm:$0xff]
    %v31 = vld [vmem:[%s3 + $0x10] sm:$0xff]
    %v32 = vld [vmem:[%s3 + $0x18] sm:$0xff]
    %v33 = vld [vmem:[%s4] sm:$0xff]
    %v34 = vld [vmem:[%s4 + $0x8] sm:$0xff]
    %v35 = vld [vmem:[%s4 + $0x10] sm:$0xff]
    %v36 = vld [vmem:[%s4 + $0x18] sm:$0xff]
    %v37 = vld [vmem:[%s5] sm:$0x7]
    %v38 = vld [vmem:[%s0] sm:$0x3]
    %v39 = vlaneseq
    %v40 = vshrl.u32 %v39, 7
    %v41 = vsub.s32 0, %v40
    %v42 = vrot.slane %v37, %v41
    %vm43 = vcmask 64512
    %v45 = vsel %vm43, %v38, 0
    %47 = vmatprep.subr.mxu0 0.0
    %48 = vmatpush1.msra.mxu0 0.0
    %49 = vmatprep.subr.mxu0 0.0
    %50 = vmatpush1.msra.mxu0 0.0
    %51 = vmatprep.subr.mxu0 0.0
    %52 = vmatpush1.msra.mxu0 0.0
    %53 = vmatprep.subr.mxu0 0.0
    %54 = vmatpush1.msra.mxu0 0.0
    %55 = vmatprep.subr.mxu0 0.0
    %56 = vmatpush1.msra.mxu0 0.0
    %57 = vmatprep.subr.mxu0 0.0
    %58 = vmatpush1.msra.mxu0 0.0
    %59 = vmatprep.subr.mxu0 0.0
    %60 = vmatpush1.msra.mxu0 0.0
    %61 = vmatprep.subr.mxu0 0.0
    %62 = vmatpush1.msra.mxu0 0.0
    %63 = vmatprep.subr.mxu0 0.0
    %64 = vmatpush1.msra.mxu0 0.0
    %65 = vmatprep.subr.mxu0 0.0
    %66 = vmatpush1.msra.mxu0 0.0
    %67 = vmatprep.subr.mxu0 0.0
    %68 = vmatpush1.msra.mxu0 0.0
    %69 = vmatprep.subr.mxu0 0.0
    %70 = vmatpush1.msra.mxu0 0.0
    %71 = vmatprep.subr.mxu0 0.0
    %72 = vmatpush1.msra.mxu0 0.0
    %73 = vmatprep.subr.mxu0 0.0
    %74 = vmatpush1.msra.mxu0 0.0
    %75 = vmatprep.subr.mxu0 0.0
    %76 = vmatpush1.msra.mxu0 0.0
    %77 = vmatprep.subr.mxu0 0.0
    %78 = vmatpush1.msra.mxu0 %v24
    %79 = vmatprep.subr.mxu0 0.0
    %80 = vmatpush2.msra.mxu0 0.0
    %81 = vmatprep.subr.mxu0 0.0
    %82 = vmatpush2.msra.mxu0 0.0
    %83 = vmatprep.subr.mxu0 0.0
    %84 = vmatpush2.msra.mxu0 0.0
    %85 = vmatprep.subr.mxu0 0.0
    %86 = vmatpush2.msra.mxu0 0.0
    %87 = vmatprep.subr.mxu0 0.0
    %88 = vmatpush2.msra.mxu0 0.0
    %89 = vmatprep.subr.mxu0 0.0
    %90 = vmatpush2.msra.mxu0 0.0
    %91 = vmatprep.subr.mxu0 0.0
    %92 = vmatpush2.msra.mxu0 0.0
    %93 = vmatprep.subr.mxu0 0.0
    %94 = vmatpush2.msra.mxu0 0.0
    %95 = vmatprep.subr.mxu0 0.0
    %96 = vmatpush2.msra.mxu0 0.0
    %97 = vmatprep.subr.mxu0 0.0
    %98 = vmatpush2.msra.mxu0 0.0
    %99 = vmatprep.subr.mxu0 0.0
    %100 = vmatpush2.msra.mxu0 0.0
    %101 = vmatprep.subr.mxu0 0.0
    %102 = vmatpush2.msra.mxu0 0.0
    %103 = vmatprep.subr.mxu0 0.0
    %104 = vmatpush2.msra.mxu0 0.0
    %105 = vmatprep.subr.mxu0 0.0
    %106 = vmatpush2.msra.mxu0 0.0
    %107 = vmatprep.subr.mxu0 0.0
    %108 = vmatpush2.msra.mxu0 0.0
    %109 = vmatprep.subr.mxu0 0.0
    %110 = vmatpush2.msra.mxu0 0.0
    %111 = vmatprep.mubr.f32.mxu0 0.0
    %112 = vmatmul.mubr.f32.gmra.mxu0 %v45
    %v113 = vpop.f32.mrf.mxu0
    %v114 = vadd.f32 %v42, %v113
    %v115 = vpop.f32.mrf.mxu0
    %116 = vdwg.mxu0
    %117 = vst [vmem:[#allocation2] sm:$0x3] %v114
    %s118 = scalar_lea.vmem %s0, 2
    %v119 = vld [vmem:[%s118] sm:$0x3]
    %v121 = vsel %vm43, %v119, 0
    %123 = vmatprep.subr.mxu0 0.0
    %124 = vmatpush1.msra.mxu0 0.0
    %125 = vmatprep.subr.mxu0 0.0
    %126 = vmatpush1.msra.mxu0 0.0
    %127 = vmatprep.subr.mxu0 0.0
    %128 = vmatpush1.msra.mxu0 0.0
    %129 = vmatprep.subr.mxu0 0.0
    %130 = vmatpush1.msra.mxu0 0.0
    %131 = vmatprep.subr.mxu0 0.0
    %132 = vmatpush1.msra.mxu0 0.0
    %133 = vmatprep.subr.mxu0 0.0
    %134 = vmatpush1.msra.mxu0 0.0
    %135 = vmatprep.subr.mxu0 0.0
    %136 = vmatpush1.msra.mxu0 0.0
    %137 = vmatprep.subr.mxu0 0.0
    %138 = vmatpush1.msra.mxu0 0.0
    %139 = vmatprep.subr.mxu0 0.0
    %140 = vmatpush1.msra.mxu0 0.0
    %141 = vmatprep.subr.mxu0 0.0
    %142 = vmatpush1.msra.mxu0 0.0
    %143 = vmatprep.subr.mxu0 0.0
    %144 = vmatpush1.msra.mxu0 0.0
    %145 = vmatprep.subr.mxu0 0.0
    %146 = vmatpush1.msra.mxu0 0.0
    %147 = vmatprep.subr.mxu0 0.0
    %148 = vmatpush1.msra.mxu0 0.0
    %149 = vmatprep.subr.mxu0 0.0
    %150 = vmatpush1.msra.mxu0 0.0
    %151 = vmatprep.subr.mxu0 0.0
    %152 = vmatpush1.msra.mxu0 0.0
    %153 = vmatprep.subr.mxu0 0.0
    %154 = vmatpush1.msra.mxu0 %v24
    %155 = vmatprep.subr.mxu0 0.0
    %156 = vmatpush2.msra.mxu0 0.0
    %157 = vmatprep.subr.mxu0 0.0
    %158 = vmatpush2.msra.mxu0 0.0
    %159 = vmatprep.subr.mxu0 0.0
    %160 = vmatpush2.msra.mxu0 0.0
    %161 = vmatprep.subr.mxu0 0.0
    %162 = vmatpush2.msra.mxu0 0.0
    %163 = vmatprep.subr.mxu0 0.0
    %164 = vmatpush2.msra.mxu0 0.0
    %165 = vmatprep.subr.mxu0 0.0
    %166 = vmatpush2.msra.mxu0 0.0
    %167 = vmatprep.subr.mxu0 0.0
    %168 = vmatpush2.msra.mxu0 0.0
    %169 = vmatprep.subr.mxu0 0.0
    %170 = vmatpush2.msra.mxu0 0.0
    %171 = vmatprep.subr.mxu0 0.0
    %172 = vmatpush2.msra.mxu0 0.0
    %173 = vmatprep.subr.mxu0 0.0
    %174 = vmatpush2.msra.mxu0 0.0
    %175 = vmatprep.subr.mxu0 0.0
    %176 = vmatpush2.msra.mxu0 0.0
    %177 = vmatprep.subr.mxu0 0.0
    %178 = vmatpush2.msra.mxu0 0.0
    %179 = vmatprep.subr.mxu0 0.0
    %180 = vmatpush2.msra.mxu0 0.0
    %181 = vmatprep.subr.mxu0 0.0
    %182 = vmatpush2.msra.mxu0 0.0
    %183 = vmatprep.subr.mxu0 0.0
    %184 = vmatpush2.msra.mxu0 0.0
    %185 = vmatprep.subr.mxu0 0.0
    %186 = vmatpush2.msra.mxu0 0.0
    %187 = vmatprep.mubr.f32.mxu0 0.0
    %188 = vmatmul.mubr.f32.gmra.mxu0 %v121
    %v189 = vpop.f32.mrf.mxu0
    %v190 = vadd.f32 %v42, %v189
    %v191 = vpop.f32.mrf.mxu0
    %192 = vdwg.mxu0
    %s193 = scalar_lea.vmem [#allocation2], 2
    %194 = vst [vmem:[%s193] sm:$0x3] %v190
    %s195 = scalar_lea.vmem %s0, 4
    %v196 = vld [vmem:[%s195] sm:$0x3]
    %v198 = vsel %vm43, %v196, 0
    %200 = vmatprep.subr.mxu0 0.0
    %201 = vmatpush1.msra.mxu0 0.0
    %202 = vmatprep.subr.mxu0 0.0
    %203 = vmatpush1.msra.mxu0 0.0
    %204 = vmatprep.subr.mxu0 0.0
    %205 = vmatpush1.msra.mxu0 0.0
    %206 = vmatprep.subr.mxu0 0.0
    %207 = vmatpush1.msra.mxu0 0.0
    %208 = vmatprep.subr.mxu0 0.0
    %209 = vmatpush1.msra.mxu0 0.0
    %210 = vmatprep.subr.mxu0 0.0
    %211 = vmatpush1.msra.mxu0 0.0
    %212 = vmatprep.subr.mxu0 0.0
    %213 = vmatpush1.msra.mxu0 0.0
    %214 = vmatprep.subr.mxu0 0.0
    %215 = vmatpush1.msra.mxu0 0.0
    %216 = vmatprep.subr.mxu0 0.0
    %217 = vmatpush1.msra.mxu0 0.0
    %218 = vmatprep.subr.mxu0 0.0
    %219 = vmatpush1.msra.mxu0 0.0
    %220 = vmatprep.subr.mxu0 0.0
    %221 = vmatpush1.msra.mxu0 0.0
    %222 = vmatprep.subr.mxu0 0.0
    %223 = vmatpush1.msra.mxu0 0.0
    %224 = vmatprep.subr.mxu0 0.0
    %225 = vmatpush1.msra.mxu0 0.0
    %226 = vmatprep.subr.mxu0 0.0
    %227 = vmatpush1.msra.mxu0 0.0
    %228 = vmatprep.subr.mxu0 0.0
    %229 = vmatpush1.msra.mxu0 0.0
    %230 = vmatprep.subr.mxu0 0.0
    %231 = vmatpush1.msra.mxu0 %v24
    %232 = vmatprep.subr.mxu0 0.0
    %233 = vmatpush2.msra.mxu0 0.0
    %234 = vmatprep.subr.mxu0 0.0
    %235 = vmatpush2.msra.mxu0 0.0
    %236 = vmatprep.subr.mxu0 0.0
    %237 = vmatpush2.msra.mxu0 0.0
    %238 = vmatprep.subr.mxu0 0.0
    %239 = vmatpush2.msra.mxu0 0.0
    %240 = vmatprep.subr.mxu0 0.0
    %241 = vmatpush2.msra.mxu0 0.0
    %242 = vmatprep.subr.mxu0 0.0
    %243 = vmatpush2.msra.mxu0 0.0
    %244 = vmatprep.subr.mxu0 0.0
    %245 = vmatpush2.msra.mxu0 0.0
    %246 = vmatprep.subr.mxu0 0.0
    %247 = vmatpush2.msra.mxu0 0.0
    %248 = vmatprep.subr.mxu0 0.0
    %249 = vmatpush2.msra.mxu0 0.0
    %250 = vmatprep.subr.mxu0 0.0
    %251 = vmatpush2.msra.mxu0 0.0
    %252 = vmatprep.subr.mxu0 0.0
    %253 = vmatpush2.msra.mxu0 0.0
    %254 = vmatprep.subr.mxu0 0.0
    %255 = vmatpush2.msra.mxu0 0.0
    %256 = vmatprep.subr.mxu0 0.0
    %257 = vmatpush2.msra.mxu0 0.0
    %258 = vmatprep.subr.mxu0 0.0
    %259 = vmatpush2.msra.mxu0 0.0
    %260 = vmatprep.subr.mxu0 0.0
    %261 = vmatpush2.msra.mxu0 0.0
    %262 = vmatprep.subr.mxu0 0.0
    %263 = vmatpush2.msra.mxu0 0.0
    %264 = vmatprep.mubr.f32.mxu0 0.0
    %265 = vmatmul.mubr.f32.gmra.mxu0 %v198
    %v266 = vpop.f32.mrf.mxu0
    %v267 = vadd.f32 %v42, %v266
    %v268 = vpop.f32.mrf.mxu0
    %269 = vdwg.mxu0
    %s270 = scalar_lea.vmem [#allocation2], 4
    %271 = vst [vmem:[%s270] sm:$0x3] %v267
    %s272 = scalar_lea.vmem %s0, 6
    %v273 = vld [vmem:[%s272] sm:$0x3]
    %v275 = vsel %vm43, %v273, 0
    %277 = vmatprep.subr.mxu0 0.0
    %278 = vmatpush1.msra.mxu0 0.0
    %279 = vmatprep.subr.mxu0 0.0
    %280 = vmatpush1.msra.mxu0 0.0
    %281 = vmatprep.subr.mxu0 0.0
    %282 = vmatpush1.msra.mxu0 0.0
    %283 = vmatprep.subr.mxu0 0.0
    %284 = vmatpush1.msra.mxu0 0.0
    %285 = vmatprep.subr.mxu0 0.0
    %286 = vmatpush1.msra.mxu0 0.0
    %287 = vmatprep.subr.mxu0 0.0
    %288 = vmatpush1.msra.mxu0 0.0
    %289 = vmatprep.subr.mxu0 0.0
    %290 = vmatpush1.msra.mxu0 0.0
    %291 = vmatprep.subr.mxu0 0.0
    %292 = vmatpush1.msra.mxu0 0.0
    %293 = vmatprep.subr.mxu0 0.0
    %294 = vmatpush1.msra.mxu0 0.0
    %295 = vmatprep.subr.mxu0 0.0
    %296 = vmatpush1.msra.mxu0 0.0
    %297 = vmatprep.subr.mxu0 0.0
    %298 = vmatpush1.msra.mxu0 0.0
    %299 = vmatprep.subr.mxu0 0.0
    %300 = vmatpush1.msra.mxu0 0.0
    %301 = vmatprep.subr.mxu0 0.0
    %302 = vmatpush1.msra.mxu0 0.0
    %303 = vmatprep.subr.mxu0 0.0
    %304 = vmatpush1.msra.mxu0 0.0
    %305 = vmatprep.subr.mxu0 0.0
    %306 = vmatpush1.msra.mxu0 0.0
    %307 = vmatprep.subr.mxu0 0.0
    %308 = vmatpush1.msra.mxu0 %v24
    %309 = vmatprep.subr.mxu0 0.0
    %310 = vmatpush2.msra.mxu0 0.0
    %311 = vmatprep.subr.mxu0 0.0
    %312 = vmatpush2.msra.mxu0 0.0
    %313 = vmatprep.subr.mxu0 0.0
    %314 = vmatpush2.msra.mxu0 0.0
    %315 = vmatprep.subr.mxu0 0.0
    %316 = vmatpush2.msra.mxu0 0.0
    %317 = vmatprep.subr.mxu0 0.0
    %318 = vmatpush2.msra.mxu0 0.0
    %319 = vmatprep.subr.mxu0 0.0
    %320 = vmatpush2.msra.mxu0 0.0
    %321 = vmatprep.subr.mxu0 0.0
    %322 = vmatpush2.msra.mxu0 0.0
    %323 = vmatprep.subr.mxu0 0.0
    %324 = vmatpush2.msra.mxu0 0.0
    %325 = vmatprep.subr.mxu0 0.0
    %326 = vmatpush2.msra.mxu0 0.0
    %327 = vmatprep.subr.mxu0 0.0
    %328 = vmatpush2.msra.mxu0 0.0
    %329 = vmatprep.subr.mxu0 0.0
    %330 = vmatpush2.msra.mxu0 0.0
    %331 = vmatprep.subr.mxu0 0.0
    %332 = vmatpush2.msra.mxu0 0.0
    %333 = vmatprep.subr.mxu0 0.0
    %334 = vmatpush2.msra.mxu0 0.0
    %335 = vmatprep.subr.mxu0 0.0
    %336 = vmatpush2.msra.mxu0 0.0
    %337 = vmatprep.subr.mxu0 0.0
    %338 = vmatpush2.msra.mxu0 0.0
    %339 = vmatprep.subr.mxu0 0.0
    %340 = vmatpush2.msra.mxu0 0.0
    %341 = vmatprep.mubr.f32.mxu0 0.0
    %342 = vmatmul.mubr.f32.gmra.mxu0 %v275
    %v343 = vpop.f32.mrf.mxu0
    %v344 = vadd.f32 %v42, %v343
    %v345 = vpop.f32.mrf.mxu0
    %346 = vdwg.mxu0
    %s347 = scalar_lea.vmem [#allocation2], 6
    %348 = vst [vmem:[%s347] sm:$0x3] %v344
    %s349 = scalar_lea.vmem %s0, 8
    %v350 = vld [vmem:[%s349] sm:$0x3]
    %v352 = vsel %vm43, %v350, 0
    %354 = vmatprep.subr.mxu0 0.0
    %355 = vmatpush1.msra.mxu0 0.0
    %356 = vmatprep.subr.mxu0 0.0
    %357 = vmatpush1.msra.mxu0 0.0
    %358 = vmatprep.subr.mxu0 0.0
    %359 = vmatpush1.msra.mxu0 0.0
    %360 = vmatprep.subr.mxu0 0.0
    %361 = vmatpush1.msra.mxu0 0.0
    %362 = vmatprep.subr.mxu0 0.0
    %363 = vmatpush1.msra.mxu0 0.0
    %364 = vmatprep.subr.mxu0 0.0
    %365 = vmatpush1.msra.mxu0 0.0
    %366 = vmatprep.subr.mxu0 0.0
    %367 = vmatpush1.msra.mxu0 0.0
    %368 = vmatprep.subr.mxu0 0.0
    %369 = vmatpush1.msra.mxu0 0.0
    %370 = vmatprep.subr.mxu0 0.0
    %371 = vmatpush1.msra.mxu0 0.0
    %372 = vmatprep.subr.mxu0 0.0
    %373 = vmatpush1.msra.mxu0 0.0
    %374 = vmatprep.subr.mxu0 0.0
    %375 = vmatpush1.msra.mxu0 0.0
    %376 = vmatprep.subr.mxu0 0.0
    %377 = vmatpush1.msra.mxu0 0.0
    %378 = vmatprep.subr.mxu0 0.0
    %379 = vmatpush1.msra.mxu0 0.0
    %380 = vmatprep.subr.mxu0 0.0
    %381 = vmatpush1.msra.mxu0 0.0
    %382 = vmatprep.subr.mxu0 0.0
    %383 = vmatpush1.msra.mxu0 0.0
    %384 = vmatprep.subr.mxu0 0.0
    %385 = vmatpush1.msra.mxu0 %v24
    %386 = vmatprep.subr.mxu0 0.0
    %387 = vmatpush2.msra.mxu0 0.0
    %388 = vmatprep.subr.mxu0 0.0
    %389 = vmatpush2.msra.mxu0 0.0
    %390 = vmatprep.subr.mxu0 0.0
    %391 = vmatpush2.msra.mxu0 0.0
    %392 = vmatprep.subr.mxu0 0.0
    %393 = vmatpush2.msra.mxu0 0.0
    %394 = vmatprep.subr.mxu0 0.0
    %395 = vmatpush2.msra.mxu0 0.0
    %396 = vmatprep.subr.mxu0 0.0
    %397 = vmatpush2.msra.mxu0 0.0
    %398 = vmatprep.subr.mxu0 0.0
    %399 = vmatpush2.msra.mxu0 0.0
    %400 = vmatprep.subr.mxu0 0.0
    %401 = vmatpush2.msra.mxu0 0.0
    %402 = vmatprep.subr.mxu0 0.0
    %403 = vmatpush2.msra.mxu0 0.0
    %404 = vmatprep.subr.mxu0 0.0
    %405 = vmatpush2.msra.mxu0 0.0
    %406 = vmatprep.subr.mxu0 0.0
    %407 = vmatpush2.msra.mxu0 0.0
    %408 = vmatprep.subr.mxu0 0.0
    %409 = vmatpush2.msra.mxu0 0.0
    %410 = vmatprep.subr.mxu0 0.0
    %411 = vmatpush2.msra.mxu0 0.0
    %412 = vmatprep.subr.mxu0 0.0
    %413 = vmatpush2.msra.mxu0 0.0
    %414 = vmatprep.subr.mxu0 0.0
    %415 = vmatpush2.msra.mxu0 0.0
    %416 = vmatprep.subr.mxu0 0.0
    %417 = vmatpush2.msra.mxu0 0.0
    %418 = vmatprep.mubr.f32.mxu0 0.0
    %419 = vmatmul.mubr.f32.gmra.mxu0 %v352
    %v420 = vpop.f32.mrf.mxu0
    %v421 = vadd.f32 %v42, %v420
    %v422 = vpop.f32.mrf.mxu0
    %423 = vdwg.mxu0
    %s424 = scalar_lea.vmem [#allocation2], 8
    %425 = vst [vmem:[%s424] sm:$0x3] %v421
    %s426 = scalar_lea.vmem %s0, 10
    %v427 = vld [vmem:[%s426] sm:$0x3]
    %v429 = vsel %vm43, %v427, 0
    %431 = vmatprep.subr.mxu0 0.0
    %432 = vmatpush1.msra.mxu0 0.0
    %433 = vmatprep.subr.mxu0 0.0
    %434 = vmatpush1.msra.mxu0 0.0
    %435 = vmatprep.subr.mxu0 0.0
    %436 = vmatpush1.msra.mxu0 0.0
    %437 = vmatprep.subr.mxu0 0.0
    %438 = vmatpush1.msra.mxu0 0.0
    %439 = vmatprep.subr.mxu0 0.0
    %440 = vmatpush1.msra.mxu0 0.0
    %441 = vmatprep.subr.mxu0 0.0
    %442 = vmatpush1.msra.mxu0 0.0
    %443 = vmatprep.subr.mxu0 0.0
    %444 = vmatpush1.msra.mxu0 0.0
    %445 = vmatprep.subr.mxu0 0.0
    %446 = vmatpush1.msra.mxu0 0.0
    %447 = vmatprep.subr.mxu0 0.0
    %448 = vmatpush1.msra.mxu0 0.0
    %449 = vmatprep.subr.mxu0 0.0
    %450 = vmatpush1.msra.mxu0 0.0
    %451 = vmatprep.subr.mxu0 0.0
    %452 = vmatpush1.msra.mxu0 0.0
    %453 = vmatprep.subr.mxu0 0.0
    %454 = vmatpush1.msra.mxu0 0.0
    %455 = vmatprep.subr.mxu0 0.0
    %456 = vmatpush1.msra.mxu0 0.0
    %457 = vmatprep.subr.mxu0 0.0
    %458 = vmatpush1.msra.mxu0 0.0
    %459 = vmatprep.subr.mxu0 0.0
    %460 = vmatpush1.msra.mxu0 0.0
    %461 = vmatprep.subr.mxu0 0.0
    %462 = vmatpush1.msra.mxu0 %v24
    %463 = vmatprep.subr.mxu0 0.0
    %464 = vmatpush2.msra.mxu0 0.0
    %465 = vmatprep.subr.mxu0 0.0
    %466 = vmatpush2.msra.mxu0 0.0
    %467 = vmatprep.subr.mxu0 0.0
    %468 = vmatpush2.msra.mxu0 0.0
    %469 = vmatprep.subr.mxu0 0.0
    %470 = vmatpush2.msra.mxu0 0.0
    %471 = vmatprep.subr.mxu0 0.0
    %472 = vmatpush2.msra.mxu0 0.0
    %473 = vmatprep.subr.mxu0 0.0
    %474 = vmatpush2.msra.mxu0 0.0
    %475 = vmatprep.subr.mxu0 0.0
    %476 = vmatpush2.msra.mxu0 0.0
    %477 = vmatprep.subr.mxu0 0.0
    %478 = vmatpush2.msra.mxu0 0.0
    %479 = vmatprep.subr.mxu0 0.0
    %480 = vmatpush2.msra.mxu0 0.0
    %481 = vmatprep.subr.mxu0 0.0
    %482 = vmatpush2.msra.mxu0 0.0
    %483 = vmatprep.subr.mxu0 0.0
    %484 = vmatpush2.msra.mxu0 0.0
    %485 = vmatprep.subr.mxu0 0.0
    %486 = vmatpush2.msra.mxu0 0.0
    %487 = vmatprep.subr.mxu0 0.0
    %488 = vmatpush2.msra.mxu0 0.0
    %489 = vmatprep.subr.mxu0 0.0
    %490 = vmatpush2.msra.mxu0 0.0
    %491 = vmatprep.subr.mxu0 0.0
    %492 = vmatpush2.msra.mxu0 0.0
    %493 = vmatprep.subr.mxu0 0.0
    %494 = vmatpush2.msra.mxu0 0.0
    %495 = vmatprep.mubr.f32.mxu0 0.0
    %496 = vmatmul.mubr.f32.gmra.mxu0 %v429
    %v497 = vpop.f32.mrf.mxu0
    %v498 = vadd.f32 %v42, %v497
    %v499 = vpop.f32.mrf.mxu0
    %500 = vdwg.mxu0
    %s501 = scalar_lea.vmem [#allocation2], 10
    %502 = vst [vmem:[%s501] sm:$0x3] %v498
    %s503 = scalar_lea.vmem %s0, 12
    %v504 = vld [vmem:[%s503] sm:$0x3]
    %v506 = vsel %vm43, %v504, 0
    %508 = vmatprep.subr.mxu0 0.0
    %509 = vmatpush1.msra.mxu0 0.0
    %510 = vmatprep.subr.mxu0 0.0
    %511 = vmatpush1.msra.mxu0 0.0
    %512 = vmatprep.subr.mxu0 0.0
    %513 = vmatpush1.msra.mxu0 0.0
    %514 = vmatprep.subr.mxu0 0.0
    %515 = vmatpush1.msra.mxu0 0.0
    %516 = vmatprep.subr.mxu0 0.0
    %517 = vmatpush1.msra.mxu0 0.0
    %518 = vmatprep.subr.mxu0 0.0
    %519 = vmatpush1.msra.mxu0 0.0
    %520 = vmatprep.subr.mxu0 0.0
    %521 = vmatpush1.msra.mxu0 0.0
    %522 = vmatprep.subr.mxu0 0.0
    %523 = vmatpush1.msra.mxu0 0.0
    %524 = vmatprep.subr.mxu0 0.0
    %525 = vmatpush1.msra.mxu0 0.0
    %526 = vmatprep.subr.mxu0 0.0
    %527 = vmatpush1.msra.mxu0 0.0
    %528 = vmatprep.subr.mxu0 0.0
    %529 = vmatpush1.msra.mxu0 0.0
    %530 = vmatprep.subr.mxu0 0.0
    %531 = vmatpush1.msra.mxu0 0.0
    %532 = vmatprep.subr.mxu0 0.0
    %533 = vmatpush1.msra.mxu0 0.0
    %534 = vmatprep.subr.mxu0 0.0
    %535 = vmatpush1.msra.mxu0 0.0
    %536 = vmatprep.subr.mxu0 0.0
    %537 = vmatpush1.msra.mxu0 0.0
    %538 = vmatprep.subr.mxu0 0.0
    %539 = vmatpush1.msra.mxu0 %v24
    %540 = vmatprep.subr.mxu0 0.0
    %541 = vmatpush2.msra.mxu0 0.0
    %542 = vmatprep.subr.mxu0 0.0
    %543 = vmatpush2.msra.mxu0 0.0
    %544 = vmatprep.subr.mxu0 0.0
    %545 = vmatpush2.msra.mxu0 0.0
    %546 = vmatprep.subr.mxu0 0.0
    %547 = vmatpush2.msra.mxu0 0.0
    %548 = vmatprep.subr.mxu0 0.0
    %549 = vmatpush2.msra.mxu0 0.0
    %550 = vmatprep.subr.mxu0 0.0
    %551 = vmatpush2.msra.mxu0 0.0
    %552 = vmatprep.subr.mxu0 0.0
    %553 = vmatpush2.msra.mxu0 0.0
    %554 = vmatprep.subr.mxu0 0.0
    %555 = vmatpush2.msra.mxu0 0.0
    %556 = vmatprep.subr.mxu0 0.0
    %557 = vmatpush2.msra.mxu0 0.0
    %558 = vmatprep.subr.mxu0 0.0
    %559 = vmatpush2.msra.mxu0 0.0
    %560 = vmatprep.subr.mxu0 0.0
    %561 = vmatpush2.msra.mxu0 0.0
    %562 = vmatprep.subr.mxu0 0.0
    %563 = vmatpush2.msra.mxu0 0.0
    %564 = vmatprep.subr.mxu0 0.0
    %565 = vmatpush2.msra.mxu0 0.0
    %566 = vmatprep.subr.mxu0 0.0
    %567 = vmatpush2.msra.mxu0 0.0
    %568 = vmatprep.subr.mxu0 0.0
    %569 = vmatpush2.msra.mxu0 0.0
    %570 = vmatprep.subr.mxu0 0.0
    %571 = vmatpush2.msra.mxu0 0.0
    %572 = vmatprep.mubr.f32.mxu0 0.0
    %573 = vmatmul.mubr.f32.gmra.mxu0 %v506
    %v574 = vpop.f32.mrf.mxu0
    %v575 = vadd.f32 %v42, %v574
    %v576 = vpop.f32.mrf.mxu0
    %577 = vdwg.mxu0
    %s578 = scalar_lea.vmem [#allocation2], 12
    %579 = vst [vmem:[%s578] sm:$0x3] %v575
    %s580 = scalar_lea.vmem %s0, 14
    %v581 = vld [vmem:[%s580] sm:$0x3]
    %v583 = vsel %vm43, %v581, 0
    %585 = vmatprep.subr.mxu0 0.0
    %586 = vmatpush1.msra.mxu0 0.0
    %587 = vmatprep.subr.mxu0 0.0
    %588 = vmatpush1.msra.mxu0 0.0
    %589 = vmatprep.subr.mxu0 0.0
    %590 = vmatpush1.msra.mxu0 0.0
    %591 = vmatprep.subr.mxu0 0.0
    %592 = vmatpush1.msra.mxu0 0.0
    %593 = vmatprep.subr.mxu0 0.0
    %594 = vmatpush1.msra.mxu0 0.0
    %595 = vmatprep.subr.mxu0 0.0
    %596 = vmatpush1.msra.mxu0 0.0
    %597 = vmatprep.subr.mxu0 0.0
    %598 = vmatpush1.msra.mxu0 0.0
    %599 = vmatprep.subr.mxu0 0.0
    %600 = vmatpush1.msra.mxu0 0.0
    %601 = vmatprep.subr.mxu0 0.0
    %602 = vmatpush1.msra.mxu0 0.0
    %603 = vmatprep.subr.mxu0 0.0
    %604 = vmatpush1.msra.mxu0 0.0
    %605 = vmatprep.subr.mxu0 0.0
    %606 = vmatpush1.msra.mxu0 0.0
    %607 = vmatprep.subr.mxu0 0.0
    %608 = vmatpush1.msra.mxu0 0.0
    %609 = vmatprep.subr.mxu0 0.0
    %610 = vmatpush1.msra.mxu0 0.0
    %611 = vmatprep.subr.mxu0 0.0
    %612 = vmatpush1.msra.mxu0 0.0
    %613 = vmatprep.subr.mxu0 0.0
    %614 = vmatpush1.msra.mxu0 0.0
    %615 = vmatprep.subr.mxu0 0.0
    %616 = vmatpush1.msra.mxu0 %v24
    %617 = vmatprep.subr.mxu0 0.0
    %618 = vmatpush2.msra.mxu0 0.0
    %619 = vmatprep.subr.mxu0 0.0
    %620 = vmatpush2.msra.mxu0 0.0
    %621 = vmatprep.subr.mxu0 0.0
    %622 = vmatpush2.msra.mxu0 0.0
    %623 = vmatprep.subr.mxu0 0.0
    %624 = vmatpush2.msra.mxu0 0.0
    %625 = vmatprep.subr.mxu0 0.0
    %626 = vmatpush2.msra.mxu0 0.0
    %627 = vmatprep.subr.mxu0 0.0
    %628 = vmatpush2.msra.mxu0 0.0
    %629 = vmatprep.subr.mxu0 0.0
    %630 = vmatpush2.msra.mxu0 0.0
    %631 = vmatprep.subr.mxu0 0.0
    %632 = vmatpush2.msra.mxu0 0.0
    %633 = vmatprep.subr.mxu0 0.0
    %634 = vmatpush2.msra.mxu0 0.0
    %635 = vmatprep.subr.mxu0 0.0
    %636 = vmatpush2.msra.mxu0 0.0
    %637 = vmatprep.subr.mxu0 0.0
    %638 = vmatpush2.msra.mxu0 0.0
    %639 = vmatprep.subr.mxu0 0.0
    %640 = vmatpush2.msra.mxu0 0.0
    %641 = vmatprep.subr.mxu0 0.0
    %642 = vmatpush2.msra.mxu0 0.0
    %643 = vmatprep.subr.mxu0 0.0
    %644 = vmatpush2.msra.mxu0 0.0
    %645 = vmatprep.subr.mxu0 0.0
    %646 = vmatpush2.msra.mxu0 0.0
    %647 = vmatprep.subr.mxu0 0.0
    %648 = vmatpush2.msra.mxu0 0.0
    %649 = vmatprep.mubr.f32.mxu0 0.0
    %650 = vmatmul.mubr.f32.gmra.mxu0 %v583
    %v651 = vpop.f32.mrf.mxu0
    %v652 = vadd.f32 %v42, %v651
    %v653 = vpop.f32.mrf.mxu0
    %654 = vdwg.mxu0
    %s655 = scalar_lea.vmem [#allocation2], 14
    %656 = vst [vmem:[%s655] sm:$0x3] %v652
    %v657 = vld [vmem:[#allocation2] sm:$0x3]
    %vm658 = vcmask 261120
    %v660 = vsel %vm658, 0.0, 0
    %662 = vmatprep.subr.mxu0 0.0
    %663 = vmatpush1.msra.mxu0 0.0
    %664 = vmatprep.subr.mxu0 0.0
    %665 = vmatpush1.msra.mxu0 0.0
    %666 = vmatprep.subr.mxu0 0.0
    %667 = vmatpush1.msra.mxu0 0.0
    %668 = vmatprep.subr.mxu0 0.0
    %669 = vmatpush1.msra.mxu0 0.0
    %670 = vmatprep.subr.mxu0 0.0
    %671 = vmatpush1.msra.mxu0 0.0
    %672 = vmatprep.subr.mxu0 0.0
    %673 = vmatpush1.msra.mxu0 0.0
    %674 = vmatprep.subr.mxu0 0.0
    %675 = vmatpush1.msra.mxu0 0.0
    %676 = vmatprep.subr.mxu0 0.0
    %677 = vmatpush1.msra.mxu0 0.0
    %678 = vmatprep.subr.mxu0 0.0
    %679 = vmatpush1.msra.mxu0 0.0
    %680 = vmatprep.subr.mxu0 0.0
    %681 = vmatpush1.msra.mxu0 0.0
    %682 = vmatprep.subr.mxu0 0.0
    %683 = vmatpush1.msra.mxu0 0.0
    %684 = vmatprep.subr.mxu0 0.0
    %685 = vmatpush1.msra.mxu0 0.0
    %686 = vmatprep.subr.mxu0 0.0
    %687 = vmatpush1.msra.mxu0 %v28
    %688 = vmatprep.subr.mxu0 0.0
    %689 = vmatpush1.msra.mxu0 %v27
    %690 = vmatprep.subr.mxu0 0.0
    %691 = vmatpush1.msra.mxu0 %v26
    %692 = vmatprep.subr.mxu0 0.0
    %693 = vmatpush1.msra.mxu0 %v25
    %694 = vmatprep.subr.mxu0 0.0
    %695 = vmatpush2.msra.mxu0 0.0
    %696 = vmatprep.subr.mxu0 0.0
    %697 = vmatpush2.msra.mxu0 0.0
    %698 = vmatprep.subr.mxu0 0.0
    %699 = vmatpush2.msra.mxu0 0.0
    %700 = vmatprep.subr.mxu0 0.0
    %701 = vmatpush2.msra.mxu0 0.0
    %702 = vmatprep.subr.mxu0 0.0
    %703 = vmatpush2.msra.mxu0 0.0
    %704 = vmatprep.subr.mxu0 0.0
    %705 = vmatpush2.msra.mxu0 0.0
    %706 = vmatprep.subr.mxu0 0.0
    %707 = vmatpush2.msra.mxu0 0.0
    %708 = vmatprep.subr.mxu0 0.0
    %709 = vmatpush2.msra.mxu0 0.0
    %710 = vmatprep.subr.mxu0 0.0
    %711 = vmatpush2.msra.mxu0 0.0
    %712 = vmatprep.subr.mxu0 0.0
    %713 = vmatpush2.msra.mxu0 0.0
    %714 = vmatprep.subr.mxu0 0.0
    %715 = vmatpush2.msra.mxu0 0.0
    %716 = vmatprep.subr.mxu0 0.0
    %717 = vmatpush2.msra.mxu0 0.0
    %718 = vmatprep.subr.mxu0 0.0
    %719 = vmatpush2.msra.mxu0 0.0
    %720 = vmatprep.subr.mxu0 0.0
    %721 = vmatpush2.msra.mxu0 0.0
    %722 = vmatprep.subr.mxu0 0.0
    %723 = vmatpush2.msra.mxu0 0.0
    %724 = vmatprep.subr.mxu0 0.0
    %725 = vmatpush2.msra.mxu0 0.0
    %726 = vmatprep.mubr.f32.mxu0 0.0
    %727 = vmatmul.mubr.f32.gmra.mxu0 %v660
    %v728 = vpop.f32.mrf.mxu0
    %v729 = vadd.f32 0.0, %v728
    %v730 = vpop.f32.mrf.mxu0
    %731 = vdwg.mxu0
    %v732 = vadd.f32 %v657, %v729
    %v733 = vxor.u32 %v732, 2147483648
    %v734 = vmul.f32 %v733, 1.442695
    %v735 = vpow.pop %v734
    %v736 = vadd.f32 %v735, 1.0
    %v737 = vrcp.pop %v736
    %v738 = vmul.f32 1.0, %v737
    %v739 = vtanh.pop %v732
    %v740 = vmul.f32 %v738, 0.0
    %742 = vrot.lane.b32.xlu0 %v739, 64
    %v743 = vpop.permute.xlu0 %742
    %v745 = vmul.f32 %v738, %v743
    %747 = vrot.lane.b32.xlu0 %v745, 32
    %v748 = vpop.permute.xlu0 %747
    %v750 = vadd.f32 %v740, %v748
    %v751 = vtanh.pop %v750
    %753 = vrot.lane.b32.xlu0 %v751, 64
    %v754 = vpop.permute.xlu0 %753
    %v756 = vmul.f32 %v738, %v754
    %v757 = vld [vmem:[%s193] sm:$0x3]
    %759 = vrot.lane.b32.xlu0 %v756, 32
    %v760 = vpop.permute.xlu0 %759
    %v761 = vsel %vm658, %v760, 0
    %763 = vmatprep.subr.mxu0 0.0
    %764 = vmatpush1.msra.mxu0 0.0
    %765 = vmatprep.subr.mxu0 0.0
    %766 = vmatpush1.msra.mxu0 0.0
    %767 = vmatprep.subr.mxu0 0.0
    %768 = vmatpush1.msra.mxu0 0.0
    %769 = vmatprep.subr.mxu0 0.0
    %770 = vmatpush1.msra.mxu0 0.0
    %771 = vmatprep.subr.mxu0 0.0
    %772 = vmatpush1.msra.mxu0 0.0
    %773 = vmatprep.subr.mxu0 0.0
    %774 = vmatpush1.msra.mxu0 0.0
    %775 = vmatprep.subr.mxu0 0.0
    %776 = vmatpush1.msra.mxu0 0.0
    %777 = vmatprep.subr.mxu0 0.0
    %778 = vmatpush1.msra.mxu0 0.0
    %779 = vmatprep.subr.mxu0 0.0
    %780 = vmatpush1.msra.mxu0 0.0
    %781 = vmatprep.subr.mxu0 0.0
    %782 = vmatpush1.msra.mxu0 0.0
    %783 = vmatprep.subr.mxu0 0.0
    %784 = vmatpush1.msra.mxu0 0.0
    %785 = vmatprep.subr.mxu0 0.0
    %786 = vmatpush1.msra.mxu0 0.0
    %787 = vmatprep.subr.mxu0 0.0
    %788 = vmatpush1.msra.mxu0 %v28
    %789 = vmatprep.subr.mxu0 0.0
    %790 = vmatpush1.msra.mxu0 %v27
    %791 = vmatprep.subr.mxu0 0.0
    %792 = vmatpush1.msra.mxu0 %v26
    %793 = vmatprep.subr.mxu0 0.0
    %794 = vmatpush1.msra.mxu0 %v25
    %795 = vmatprep.subr.mxu0 0.0
    %796 = vmatpush2.msra.mxu0 0.0
    %797 = vmatprep.subr.mxu0 0.0
    %798 = vmatpush2.msra.mxu0 0.0
    %799 = vmatprep.subr.mxu0 0.0
    %800 = vmatpush2.msra.mxu0 0.0
    %801 = vmatprep.subr.mxu0 0.0
    %802 = vmatpush2.msra.mxu0 0.0
    %803 = vmatprep.subr.mxu0 0.0
    %804 = vmatpush2.msra.mxu0 0.0
    %805 = vmatprep.subr.mxu0 0.0
    %806 = vmatpush2.msra.mxu0 0.0
    %807 = vmatprep.subr.mxu0 0.0
    %808 = vmatpush2.msra.mxu0 0.0
    %809 = vmatprep.subr.mxu0 0.0
    %810 = vmatpush2.msra.mxu0 0.0
    %811 = vmatprep.subr.mxu0 0.0
    %812 = vmatpush2.msra.mxu0 0.0
    %813 = vmatprep.subr.mxu0 0.0
    %814 = vmatpush2.msra.mxu0 0.0
    %815 = vmatprep.subr.mxu0 0.0
    %816 = vmatpush2.msra.mxu0 0.0
    %817 = vmatprep.subr.mxu0 0.0
    %818 = vmatpush2.msra.mxu0 0.0
    %819 = vmatprep.subr.mxu0 0.0
    %820 = vmatpush2.msra.mxu0 0.0
    %821 = vmatprep.subr.mxu0 0.0
    %822 = vmatpush2.msra.mxu0 0.0
    %823 = vmatprep.subr.mxu0 0.0
    %824 = vmatpush2.msra.mxu0 0.0
    %825 = vmatprep.subr.mxu0 0.0
    %826 = vmatpush2.msra.mxu0 0.0
    %827 = vmatprep.mubr.f32.mxu0 0.0
    %828 = vmatmul.mubr.f32.gmra.mxu0 %v761
    %v829 = vpop.f32.mrf.mxu0
    %v830 = vadd.f32 0.0, %v829
    %v831 = vpop.f32.mrf.mxu0
    %832 = vdwg.mxu0
    %v833 = vadd.f32 %v757, %v830
    %v834 = vxor.u32 %v833, 2147483648
    %v835 = vmul.f32 %v834, 1.442695
    %v836 = vpow.pop %v835
    %v837 = vadd.f32 %v836, 1.0
    %v838 = vrcp.pop %v837
    %v839 = vmul.f32 1.0, %v838
    %v840 = vtanh.pop %v833
    %v841 = vmul.f32 %v839, %v750
    %843 = vrot.lane.b32.xlu0 %v840, 64
    %v844 = vpop.permute.xlu0 %843
    %v846 = vmul.f32 %v839, %v844
    %848 = vrot.lane.b32.xlu0 %v846, 32
    %v849 = vpop.permute.xlu0 %848
    %v851 = vadd.f32 %v841, %v849
    %v852 = vtanh.pop %v851
    %854 = vrot.lane.b32.xlu0 %v852, 64
    %v855 = vpop.permute.xlu0 %854
    %v857 = vmul.f32 %v839, %v855
    %v858 = vld [vmem:[%s270] sm:$0x3]
    %860 = vrot.lane.b32.xlu0 %v857, 32
    %v861 = vpop.permute.xlu0 %860
    %v862 = vsel %vm658, %v861, 0
    %864 = vmatprep.subr.mxu0 0.0
    %865 = vmatpush1.msra.mxu0 0.0
    %866 = vmatprep.subr.mxu0 0.0
    %867 = vmatpush1.msra.mxu0 0.0
    %868 = vmatprep.subr.mxu0 0.0
    %869 = vmatpush1.msra.mxu0 0.0
    %870 = vmatprep.subr.mxu0 0.0
    %871 = vmatpush1.msra.mxu0 0.0
    %872 = vmatprep.subr.mxu0 0.0
    %873 = vmatpush1.msra.mxu0 0.0
    %874 = vmatprep.subr.mxu0 0.0
    %875 = vmatpush1.msra.mxu0 0.0
    %876 = vmatprep.subr.mxu0 0.0
    %877 = vmatpush1.msra.mxu0 0.0
    %878 = vmatprep.subr.mxu0 0.0
    %879 = vmatpush1.msra.mxu0 0.0
    %880 = vmatprep.subr.mxu0 0.0
    %881 = vmatpush1.msra.mxu0 0.0
    %882 = vmatprep.subr.mxu0 0.0
    %883 = vmatpush1.msra.mxu0 0.0
    %884 = vmatprep.subr.mxu0 0.0
    %885 = vmatpush1.msra.mxu0 0.0
    %886 = vmatprep.subr.mxu0 0.0
    %887 = vmatpush1.msra.mxu0 0.0
    %888 = vmatprep.subr.mxu0 0.0
    %889 = vmatpush1.msra.mxu0 %v28
    %890 = vmatprep.subr.mxu0 0.0
    %891 = vmatpush1.msra.mxu0 %v27
    %892 = vmatprep.subr.mxu0 0.0
    %893 = vmatpush1.msra.mxu0 %v26
    %894 = vmatprep.subr.mxu0 0.0
    %895 = vmatpush1.msra.mxu0 %v25
    %896 = vmatprep.subr.mxu0 0.0
    %897 = vmatpush2.msra.mxu0 0.0
    %898 = vmatprep.subr.mxu0 0.0
    %899 = vmatpush2.msra.mxu0 0.0
    %900 = vmatprep.subr.mxu0 0.0
    %901 = vmatpush2.msra.mxu0 0.0
    %902 = vmatprep.subr.mxu0 0.0
    %903 = vmatpush2.msra.mxu0 0.0
    %904 = vmatprep.subr.mxu0 0.0
    %905 = vmatpush2.msra.mxu0 0.0
    %906 = vmatprep.subr.mxu0 0.0
    %907 = vmatpush2.msra.mxu0 0.0
    %908 = vmatprep.subr.mxu0 0.0
    %909 = vmatpush2.msra.mxu0 0.0
    %910 = vmatprep.subr.mxu0 0.0
    %911 = vmatpush2.msra.mxu0 0.0
    %912 = vmatprep.subr.mxu0 0.0
    %913 = vmatpush2.msra.mxu0 0.0
    %914 = vmatprep.subr.mxu0 0.0
    %915 = vmatpush2.msra.mxu0 0.0
    %916 = vmatprep.subr.mxu0 0.0
    %917 = vmatpush2.msra.mxu0 0.0
    %918 = vmatprep.subr.mxu0 0.0
    %919 = vmatpush2.msra.mxu0 0.0
    %920 = vmatprep.subr.mxu0 0.0
    %921 = vmatpush2.msra.mxu0 0.0
    %922 = vmatprep.subr.mxu0 0.0
    %923 = vmatpush2.msra.mxu0 0.0
    %924 = vmatprep.subr.mxu0 0.0
    %925 = vmatpush2.msra.mxu0 0.0
    %926 = vmatprep.subr.mxu0 0.0
    %927 = vmatpush2.msra.mxu0 0.0
    %928 = vmatprep.mubr.f32.mxu0 0.0
    %929 = vmatmul.mubr.f32.gmra.mxu0 %v862
    %v930 = vpop.f32.mrf.mxu0
    %v931 = vadd.f32 0.0, %v930
    %v932 = vpop.f32.mrf.mxu0
    %933 = vdwg.mxu0
    %v934 = vadd.f32 %v858, %v931
    %v935 = vxor.u32 %v934, 2147483648
    %v936 = vmul.f32 %v935, 1.442695
    %v937 = vpow.pop %v936
    %v938 = vadd.f32 %v937, 1.0
    %v939 = vrcp.pop %v938
    %v940 = vmul.f32 1.0, %v939
    %v941 = vtanh.pop %v934
    %v942 = vmul.f32 %v940, %v851
    %944 = vrot.lane.b32.xlu0 %v941, 64
    %v945 = vpop.permute.xlu0 %944
    %v947 = vmul.f32 %v940, %v945
    %949 = vrot.lane.b32.xlu0 %v947, 32
    %v950 = vpop.permute.xlu0 %949
    %v952 = vadd.f32 %v942, %v950
    %v953 = vtanh.pop %v952
    %955 = vrot.lane.b32.xlu0 %v953, 64
    %v956 = vpop.permute.xlu0 %955
    %v958 = vmul.f32 %v940, %v956
    %v959 = vld [vmem:[%s347] sm:$0x3]
    %961 = vrot.lane.b32.xlu0 %v958, 32
    %v962 = vpop.permute.xlu0 %961
    %v963 = vsel %vm658, %v962, 0
    %965 = vmatprep.subr.mxu0 0.0
    %966 = vmatpush1.msra.mxu0 0.0
    %967 = vmatprep.subr.mxu0 0.0
    %968 = vmatpush1.msra.mxu0 0.0
    %969 = vmatprep.subr.mxu0 0.0
    %970 = vmatpush1.msra.mxu0 0.0
    %971 = vmatprep.subr.mxu0 0.0
    %972 = vmatpush1.msra.mxu0 0.0
    %973 = vmatprep.subr.mxu0 0.0
    %974 = vmatpush1.msra.mxu0 0.0
    %975 = vmatprep.subr.mxu0 0.0
    %976 = vmatpush1.msra.mxu0 0.0
    %977 = vmatprep.subr.mxu0 0.0
    %978 = vmatpush1.msra.mxu0 0.0
    %979 = vmatprep.subr.mxu0 0.0
    %980 = vmatpush1.msra.mxu0 0.0
    %981 = vmatprep.subr.mxu0 0.0
    %982 = vmatpush1.msra.mxu0 0.0
    %983 = vmatprep.subr.mxu0 0.0
    %984 = vmatpush1.msra.mxu0 0.0
    %985 = vmatprep.subr.mxu0 0.0
    %986 = vmatpush1.msra.mxu0 0.0
    %987 = vmatprep.subr.mxu0 0.0
    %988 = vmatpush1.msra.mxu0 0.0
    %989 = vmatprep.subr.mxu0 0.0
    %990 = vmatpush1.msra.mxu0 %v28
    %991 = vmatprep.subr.mxu0 0.0
    %992 = vmatpush1.msra.mxu0 %v27
    %993 = vmatprep.subr.mxu0 0.0
    %994 = vmatpush1.msra.mxu0 %v26
    %995 = vmatprep.subr.mxu0 0.0
    %996 = vmatpush1.msra.mxu0 %v25
    %997 = vmatprep.subr.mxu0 0.0
    %998 = vmatpush2.msra.mxu0 0.0
    %999 = vmatprep.subr.mxu0 0.0
    %1000 = vmatpush2.msra.mxu0 0.0
    %1001 = vmatprep.subr.mxu0 0.0
    %1002 = vmatpush2.msra.mxu0 0.0
    %1003 = vmatprep.subr.mxu0 0.0
    %1004 = vmatpush2.msra.mxu0 0.0
    %1005 = vmatprep.subr.mxu0 0.0
    %1006 = vmatpush2.msra.mxu0 0.0
    %1007 = vmatprep.subr.mxu0 0.0
    %1008 = vmatpush2.msra.mxu0 0.0
    %1009 = vmatprep.subr.mxu0 0.0
    %1010 = vmatpush2.msra.mxu0 0.0
    %1011 = vmatprep.subr.mxu0 0.0
    %1012 = vmatpush2.msra.mxu0 0.0
    %1013 = vmatprep.subr.mxu0 0.0
    %1014 = vmatpush2.msra.mxu0 0.0
    %1015 = vmatprep.subr.mxu0 0.0
    %1016 = vmatpush2.msra.mxu0 0.0
    %1017 = vmatprep.subr.mxu0 0.0
    %1018 = vmatpush2.msra.mxu0 0.0
    %1019 = vmatprep.subr.mxu0 0.0
    %1020 = vmatpush2.msra.mxu0 0.0
    %1021 = vmatprep.subr.mxu0 0.0
    %1022 = vmatpush2.msra.mxu0 0.0
    %1023 = vmatprep.subr.mxu0 0.0
    %1024 = vmatpush2.msra.mxu0 0.0
    %1025 = vmatprep.subr.mxu0 0.0
    %1026 = vmatpush2.msra.mxu0 0.0
    %1027 = vmatprep.subr.mxu0 0.0
    %1028 = vmatpush2.msra.mxu0 0.0
    %1029 = vmatprep.mubr.f32.mxu0 0.0
    %1030 = vmatmul.mubr.f32.gmra.mxu0 %v963
    %v1031 = vpop.f32.mrf.mxu0
    %v1032 = vadd.f32 0.0, %v1031
    %v1033 = vpop.f32.mrf.mxu0
    %1034 = vdwg.mxu0
    %v1035 = vadd.f32 %v959, %v1032
    %v1036 = vxor.u32 %v1035, 2147483648
    %v1037 = vmul.f32 %v1036, 1.442695
    %v1038 = vpow.pop %v1037
    %v1039 = vadd.f32 %v1038, 1.0
    %v1040 = vrcp.pop %v1039
    %v1041 = vmul.f32 1.0, %v1040
    %v1042 = vtanh.pop %v1035
    %v1043 = vmul.f32 %v1041, %v952
    %1045 = vrot.lane.b32.xlu0 %v1042, 64
    %v1046 = vpop.permute.xlu0 %1045
    %v1048 = vmul.f32 %v1041, %v1046
    %1050 = vrot.lane.b32.xlu0 %v1048, 32
    %v1051 = vpop.permute.xlu0 %1050
    %v1053 = vadd.f32 %v1043, %v1051
    %v1054 = vtanh.pop %v1053
    %1056 = vrot.lane.b32.xlu0 %v1054, 64
    %v1057 = vpop.permute.xlu0 %1056
    %v1059 = vmul.f32 %v1041, %v1057
    %v1060 = vld [vmem:[%s424] sm:$0x3]
    %1062 = vrot.lane.b32.xlu0 %v1059, 32
    %v1063 = vpop.permute.xlu0 %1062
    %v1064 = vsel %vm658, %v1063, 0
    %1066 = vmatprep.subr.mxu0 0.0
    %1067 = vmatpush1.msra.mxu0 0.0
    %1068 = vmatprep.subr.mxu0 0.0
    %1069 = vmatpush1.msra.mxu0 0.0
    %1070 = vmatprep.subr.mxu0 0.0
    %1071 = vmatpush1.msra.mxu0 0.0
    %1072 = vmatprep.subr.mxu0 0.0
    %1073 = vmatpush1.msra.mxu0 0.0
    %1074 = vmatprep.subr.mxu0 0.0
    %1075 = vmatpush1.msra.mxu0 0.0
    %1076 = vmatprep.subr.mxu0 0.0
    %1077 = vmatpush1.msra.mxu0 0.0
    %1078 = vmatprep.subr.mxu0 0.0
    %1079 = vmatpush1.msra.mxu0 0.0
    %1080 = vmatprep.subr.mxu0 0.0
    %1081 = vmatpush1.msra.mxu0 0.0
    %1082 = vmatprep.subr.mxu0 0.0
    %1083 = vmatpush1.msra.mxu0 0.0
    %1084 = vmatprep.subr.mxu0 0.0
    %1085 = vmatpush1.msra.mxu0 0.0
    %1086 = vmatprep.subr.mxu0 0.0
    %1087 = vmatpush1.msra.mxu0 0.0
    %1088 = vmatprep.subr.mxu0 0.0
    %1089 = vmatpush1.msra.mxu0 0.0
    %1090 = vmatprep.subr.mxu0 0.0
    %1091 = vmatpush1.msra.mxu0 %v28
    %1092 = vmatprep.subr.mxu0 0.0
    %1093 = vmatpush1.msra.mxu0 %v27
    %1094 = vmatprep.subr.mxu0 0.0
    %1095 = vmatpush1.msra.mxu0 %v26
    %1096 = vmatprep.subr.mxu0 0.0
    %1097 = vmatpush1.msra.mxu0 %v25
    %1098 = vmatprep.subr.mxu0 0.0
    %1099 = vmatpush2.msra.mxu0 0.0
    %1100 = vmatprep.subr.mxu0 0.0
    %1101 = vmatpush2.msra.mxu0 0.0
    %1102 = vmatprep.subr.mxu0 0.0
    %1103 = vmatpush2.msra.mxu0 0.0
    %1104 = vmatprep.subr.mxu0 0.0
    %1105 = vmatpush2.msra.mxu0 0.0
    %1106 = vmatprep.subr.mxu0 0.0
    %1107 = vmatpush2.msra.mxu0 0.0
    %1108 = vmatprep.subr.mxu0 0.0
    %1109 = vmatpush2.msra.mxu0 0.0
    %1110 = vmatprep.subr.mxu0 0.0
    %1111 = vmatpush2.msra.mxu0 0.0
    %1112 = vmatprep.subr.mxu0 0.0
    %1113 = vmatpush2.msra.mxu0 0.0
    %1114 = vmatprep.subr.mxu0 0.0
    %1115 = vmatpush2.msra.mxu0 0.0
    %1116 = vmatprep.subr.mxu0 0.0
    %1117 = vmatpush2.msra.mxu0 0.0
    %1118 = vmatprep.subr.mxu0 0.0
    %1119 = vmatpush2.msra.mxu0 0.0
    %1120 = vmatprep.subr.mxu0 0.0
    %1121 = vmatpush2.msra.mxu0 0.0
    %1122 = vmatprep.subr.mxu0 0.0
    %1123 = vmatpush2.msra.mxu0 0.0
    %1124 = vmatprep.subr.mxu0 0.0
    %1125 = vmatpush2.msra.mxu0 0.0
    %1126 = vmatprep.subr.mxu0 0.0
    %1127 = vmatpush2.msra.mxu0 0.0
    %1128 = vmatprep.subr.mxu0 0.0
    %1129 = vmatpush2.msra.mxu0 0.0
    %1130 = vmatprep.mubr.f32.mxu0 0.0
    %1131 = vmatmul.mubr.f32.gmra.mxu0 %v1064
    %v1132 = vpop.f32.mrf.mxu0
    %v1133 = vadd.f32 0.0, %v1132
    %v1134 = vpop.f32.mrf.mxu0
    %1135 = vdwg.mxu0
    %v1136 = vadd.f32 %v1060, %v1133
    %v1137 = vxor.u32 %v1136, 2147483648
    %v1138 = vmul.f32 %v1137, 1.442695
    %v1139 = vpow.pop %v1138
    %v1140 = vadd.f32 %v1139, 1.0
    %v1141 = vrcp.pop %v1140
    %v1142 = vmul.f32 1.0, %v1141
    %v1143 = vtanh.pop %v1136
    %v1144 = vmul.f32 %v1142, %v1053
    %1146 = vrot.lane.b32.xlu0 %v1143, 64
    %v1147 = vpop.permute.xlu0 %1146
    %v1149 = vmul.f32 %v1142, %v1147
    %1151 = vrot.lane.b32.xlu0 %v1149, 32
    %v1152 = vpop.permute.xlu0 %1151
    %v1154 = vadd.f32 %v1144, %v1152
    %v1155 = vtanh.pop %v1154
    %1157 = vrot.lane.b32.xlu0 %v1155, 64
    %v1158 = vpop.permute.xlu0 %1157
    %v1160 = vmul.f32 %v1142, %v1158
    %v1161 = vld [vmem:[%s501] sm:$0x3]
    %1163 = vrot.lane.b32.xlu0 %v1160, 32
    %v1164 = vpop.permute.xlu0 %1163
    %v1165 = vsel %vm658, %v1164, 0
    %1167 = vmatprep.subr.mxu0 0.0
    %1168 = vmatpush1.msra.mxu0 0.0
    %1169 = vmatprep.subr.mxu0 0.0
    %1170 = vmatpush1.msra.mxu0 0.0
    %1171 = vmatprep.subr.mxu0 0.0
    %1172 = vmatpush1.msra.mxu0 0.0
    %1173 = vmatprep.subr.mxu0 0.0
    %1174 = vmatpush1.msra.mxu0 0.0
    %1175 = vmatprep.subr.mxu0 0.0
    %1176 = vmatpush1.msra.mxu0 0.0
    %1177 = vmatprep.subr.mxu0 0.0
    %1178 = vmatpush1.msra.mxu0 0.0
    %1179 = vmatprep.subr.mxu0 0.0
    %1180 = vmatpush1.msra.mxu0 0.0
    %1181 = vmatprep.subr.mxu0 0.0
    %1182 = vmatpush1.msra.mxu0 0.0
    %1183 = vmatprep.subr.mxu0 0.0
    %1184 = vmatpush1.msra.mxu0 0.0
    %1185 = vmatprep.subr.mxu0 0.0
    %1186 = vmatpush1.msra.mxu0 0.0
    %1187 = vmatprep.subr.mxu0 0.0
    %1188 = vmatpush1.msra.mxu0 0.0
    %1189 = vmatprep.subr.mxu0 0.0
    %1190 = vmatpush1.msra.mxu0 0.0
    %1191 = vmatprep.subr.mxu0 0.0
    %1192 = vmatpush1.msra.mxu0 %v28
    %1193 = vmatprep.subr.mxu0 0.0
    %1194 = vmatpush1.msra.mxu0 %v27
    %1195 = vmatprep.subr.mxu0 0.0
    %1196 = vmatpush1.msra.mxu0 %v26
    %1197 = vmatprep.subr.mxu0 0.0
    %1198 = vmatpush1.msra.mxu0 %v25
    %1199 = vmatprep.subr.mxu0 0.0
    %1200 = vmatpush2.msra.mxu0 0.0
    %1201 = vmatprep.subr.mxu0 0.0
    %1202 = vmatpush2.msra.mxu0 0.0
    %1203 = vmatprep.subr.mxu0 0.0
    %1204 = vmatpush2.msra.mxu0 0.0
    %1205 = vmatprep.subr.mxu0 0.0
    %1206 = vmatpush2.msra.mxu0 0.0
    %1207 = vmatprep.subr.mxu0 0.0
    %1208 = vmatpush2.msra.mxu0 0.0
    %1209 = vmatprep.subr.mxu0 0.0
    %1210 = vmatpush2.msra.mxu0 0.0
    %1211 = vmatprep.subr.mxu0 0.0
    %1212 = vmatpush2.msra.mxu0 0.0
    %1213 = vmatprep.subr.mxu0 0.0
    %1214 = vmatpush2.msra.mxu0 0.0
    %1215 = vmatprep.subr.mxu0 0.0
    %1216 = vmatpush2.msra.mxu0 0.0
    %1217 = vmatprep.subr.mxu0 0.0
    %1218 = vmatpush2.msra.mxu0 0.0
    %1219 = vmatprep.subr.mxu0 0.0
    %1220 = vmatpush2.msra.mxu0 0.0
    %1221 = vmatprep.subr.mxu0 0.0
    %1222 = vmatpush2.msra.mxu0 0.0
    %1223 = vmatprep.subr.mxu0 0.0
    %1224 = vmatpush2.msra.mxu0 0.0
    %1225 = vmatprep.subr.mxu0 0.0
    %1226 = vmatpush2.msra.mxu0 0.0
    %1227 = vmatprep.subr.mxu0 0.0
    %1228 = vmatpush2.msra.mxu0 0.0
    %1229 = vmatprep.subr.mxu0 0.0
    %1230 = vmatpush2.msra.mxu0 0.0
    %1231 = vmatprep.mubr.f32.mxu0 0.0
    %1232 = vmatmul.mubr.f32.gmra.mxu0 %v1165
    %v1233 = vpop.f32.mrf.mxu0
    %v1234 = vadd.f32 0.0, %v1233
    %v1235 = vpop.f32.mrf.mxu0
    %1236 = vdwg.mxu0
    %v1237 = vadd.f32 %v1161, %v1234
    %v1238 = vxor.u32 %v1237, 2147483648
    %v1239 = vmul.f32 %v1238, 1.442695
    %v1240 = vpow.pop %v1239
    %v1241 = vadd.f32 %v1240, 1.0
    %v1242 = vrcp.pop %v1241
    %v1243 = vmul.f32 1.0, %v1242
    %v1244 = vtanh.pop %v1237
    %v1245 = vmul.f32 %v1243, %v1154
    %1247 = vrot.lane.b32.xlu0 %v1244, 64
    %v1248 = vpop.permute.xlu0 %1247
    %v1250 = vmul.f32 %v1243, %v1248
    %1252 = vrot.lane.b32.xlu0 %v1250, 32
    %v1253 = vpop.permute.xlu0 %1252
    %v1255 = vadd.f32 %v1245, %v1253
    %v1256 = vtanh.pop %v1255
    %1258 = vrot.lane.b32.xlu0 %v1256, 64
    %v1259 = vpop.permute.xlu0 %1258
    %v1261 = vmul.f32 %v1243, %v1259
    %v1262 = vld [vmem:[%s578] sm:$0x3]
    %1264 = vrot.lane.b32.xlu0 %v1261, 32
    %v1265 = vpop.permute.xlu0 %1264
    %v1266 = vsel %vm658, %v1265, 0
    %1268 = vmatprep.subr.mxu0 0.0
    %1269 = vmatpush1.msra.mxu0 0.0
    %1270 = vmatprep.subr.mxu0 0.0
    %1271 = vmatpush1.msra.mxu0 0.0
    %1272 = vmatprep.subr.mxu0 0.0
    %1273 = vmatpush1.msra.mxu0 0.0
    %1274 = vmatprep.subr.mxu0 0.0
    %1275 = vmatpush1.msra.mxu0 0.0
    %1276 = vmatprep.subr.mxu0 0.0
    %1277 = vmatpush1.msra.mxu0 0.0
    %1278 = vmatprep.subr.mxu0 0.0
    %1279 = vmatpush1.msra.mxu0 0.0
    %1280 = vmatprep.subr.mxu0 0.0
    %1281 = vmatpush1.msra.mxu0 0.0
    %1282 = vmatprep.subr.mxu0 0.0
    %1283 = vmatpush1.msra.mxu0 0.0
    %1284 = vmatprep.subr.mxu0 0.0
    %1285 = vmatpush1.msra.mxu0 0.0
    %1286 = vmatprep.subr.mxu0 0.0
    %1287 = vmatpush1.msra.mxu0 0.0
    %1288 = vmatprep.subr.mxu0 0.0
    %1289 = vmatpush1.msra.mxu0 0.0
    %1290 = vmatprep.subr.mxu0 0.0
    %1291 = vmatpush1.msra.mxu0 0.0
    %1292 = vmatprep.subr.mxu0 0.0
    %1293 = vmatpush1.msra.mxu0 %v28
    %1294 = vmatprep.subr.mxu0 0.0
    %1295 = vmatpush1.msra.mxu0 %v27
    %1296 = vmatprep.subr.mxu0 0.0
    %1297 = vmatpush1.msra.mxu0 %v26
    %1298 = vmatprep.subr.mxu0 0.0
    %1299 = vmatpush1.msra.mxu0 %v25
    %1300 = vmatprep.subr.mxu0 0.0
    %1301 = vmatpush2.msra.mxu0 0.0
    %1302 = vmatprep.subr.mxu0 0.0
    %1303 = vmatpush2.msra.mxu0 0.0
    %1304 = vmatprep.subr.mxu0 0.0
    %1305 = vmatpush2.msra.mxu0 0.0
    %1306 = vmatprep.subr.mxu0 0.0
    %1307 = vmatpush2.msra.mxu0 0.0
    %1308 = vmatprep.subr.mxu0 0.0
    %1309 = vmatpush2.msra.mxu0 0.0
    %1310 = vmatprep.subr.mxu0 0.0
    %1311 = vmatpush2.msra.mxu0 0.0
    %1312 = vmatprep.subr.mxu0 0.0
    %1313 = vmatpush2.msra.mxu0 0.0
    %1314 = vmatprep.subr.mxu0 0.0
    %1315 = vmatpush2.msra.mxu0 0.0
    %1316 = vmatprep.subr.mxu0 0.0
    %1317 = vmatpush2.msra.mxu0 0.0
    %1318 = vmatprep.subr.mxu0 0.0
    %1319 = vmatpush2.msra.mxu0 0.0
    %1320 = vmatprep.subr.mxu0 0.0
    %1321 = vmatpush2.msra.mxu0 0.0
    %1322 = vmatprep.subr.mxu0 0.0
    %1323 = vmatpush2.msra.mxu0 0.0
    %1324 = vmatprep.subr.mxu0 0.0
    %1325 = vmatpush2.msra.mxu0 0.0
    %1326 = vmatprep.subr.mxu0 0.0
    %1327 = vmatpush2.msra.mxu0 0.0
    %1328 = vmatprep.subr.mxu0 0.0
    %1329 = vmatpush2.msra.mxu0 0.0
    %1330 = vmatprep.subr.mxu0 0.0
    %1331 = vmatpush2.msra.mxu0 0.0
    %1332 = vmatprep.mubr.f32.mxu0 0.0
    %1333 = vmatmul.mubr.f32.gmra.mxu0 %v1266
    %v1334 = vpop.f32.mrf.mxu0
    %v1335 = vadd.f32 0.0, %v1334
    %v1336 = vpop.f32.mrf.mxu0
    %1337 = vdwg.mxu0
    %v1338 = vadd.f32 %v1262, %v1335
    %v1339 = vxor.u32 %v1338, 2147483648
    %v1340 = vmul.f32 %v1339, 1.442695
    %v1341 = vpow.pop %v1340
    %v1342 = vadd.f32 %v1341, 1.0
    %v1343 = vrcp.pop %v1342
    %v1344 = vmul.f32 1.0, %v1343
    %v1345 = vtanh.pop %v1338
    %v1346 = vmul.f32 %v1344, %v1255
    %1348 = vrot.lane.b32.xlu0 %v1345, 64
    %v1349 = vpop.permute.xlu0 %1348
    %v1351 = vmul.f32 %v1344, %v1349
    %1353 = vrot.lane.b32.xlu0 %v1351, 32
    %v1354 = vpop.permute.xlu0 %1353
    %v1356 = vadd.f32 %v1346, %v1354
    %v1357 = vtanh.pop %v1356
    %1359 = vrot.lane.b32.xlu0 %v1357, 64
    %v1360 = vpop.permute.xlu0 %1359
    %v1362 = vmul.f32 %v1344, %v1360
    %v1363 = vld [vmem:[%s655] sm:$0x3]
    %1365 = vrot.lane.b32.xlu0 %v1362, 32
    %v1366 = vpop.permute.xlu0 %1365
    %v1367 = vsel %vm658, %v1366, 0
    %1369 = vmatprep.subr.mxu0 0.0
    %1370 = vmatpush1.msra.mxu0 0.0
    %1371 = vmatprep.subr.mxu0 0.0
    %1372 = vmatpush1.msra.mxu0 0.0
    %1373 = vmatprep.subr.mxu0 0.0
    %1374 = vmatpush1.msra.mxu0 0.0
    %1375 = vmatprep.subr.mxu0 0.0
    %1376 = vmatpush1.msra.mxu0 0.0
    %1377 = vmatprep.subr.mxu0 0.0
    %1378 = vmatpush1.msra.mxu0 0.0
    %1379 = vmatprep.subr.mxu0 0.0
    %1380 = vmatpush1.msra.mxu0 0.0
    %1381 = vmatprep.subr.mxu0 0.0
    %1382 = vmatpush1.msra.mxu0 0.0
    %1383 = vmatprep.subr.mxu0 0.0
    %1384 = vmatpush1.msra.mxu0 0.0
    %1385 = vmatprep.subr.mxu0 0.0
    %1386 = vmatpush1.msra.mxu0 0.0
    %1387 = vmatprep.subr.mxu0 0.0
    %1388 = vmatpush1.msra.mxu0 0.0
    %1389 = vmatprep.subr.mxu0 0.0
    %1390 = vmatpush1.msra.mxu0 0.0
    %1391 = vmatprep.subr.mxu0 0.0
    %1392 = vmatpush1.msra.mxu0 0.0
    %1393 = vmatprep.subr.mxu0 0.0
    %1394 = vmatpush1.msra.mxu0 %v28
    %1395 = vmatprep.subr.mxu0 0.0
    %1396 = vmatpush1.msra.mxu0 %v27
    %1397 = vmatprep.subr.mxu0 0.0
    %1398 = vmatpush1.msra.mxu0 %v26
    %1399 = vmatprep.subr.mxu0 0.0
    %1400 = vmatpush1.msra.mxu0 %v25
    %1401 = vmatprep.subr.mxu0 0.0
    %1402 = vmatpush2.msra.mxu0 0.0
    %1403 = vmatprep.subr.mxu0 0.0
    %1404 = vmatpush2.msra.mxu0 0.0
    %1405 = vmatprep.subr.mxu0 0.0
    %1406 = vmatpush2.msra.mxu0 0.0
    %1407 = vmatprep.subr.mxu0 0.0
    %1408 = vmatpush2.msra.mxu0 0.0
    %1409 = vmatprep.subr.mxu0 0.0
    %1410 = vmatpush2.msra.mxu0 0.0
    %1411 = vmatprep.subr.mxu0 0.0
    %1412 = vmatpush2.msra.mxu0 0.0
    %1413 = vmatprep.subr.mxu0 0.0
    %1414 = vmatpush2.msra.mxu0 0.0
    %1415 = vmatprep.subr.mxu0 0.0
    %1416 = vmatpush2.msra.mxu0 0.0
    %1417 = vmatprep.subr.mxu0 0.0
    %1418 = vmatpush2.msra.mxu0 0.0
    %1419 = vmatprep.subr.mxu0 0.0
    %1420 = vmatpush2.msra.mxu0 0.0
    %1421 = vmatprep.subr.mxu0 0.0
    %1422 = vmatpush2.msra.mxu0 0.0
    %1423 = vmatprep.subr.mxu0 0.0
    %1424 = vmatpush2.msra.mxu0 0.0
    %1425 = vmatprep.subr.mxu0 0.0
    %1426 = vmatpush2.msra.mxu0 0.0
    %1427 = vmatprep.subr.mxu0 0.0
    %1428 = vmatpush2.msra.mxu0 0.0
    %1429 = vmatprep.subr.mxu0 0.0
    %1430 = vmatpush2.msra.mxu0 0.0
    %1431 = vmatprep.subr.mxu0 0.0
    %1432 = vmatpush2.msra.mxu0 0.0
    %1433 = vmatprep.mubr.f32.mxu0 0.0
    %1434 = vmatmul.mubr.f32.gmra.mxu0 %v1367
    %v1435 = vpop.f32.mrf.mxu0
    %v1436 = vadd.f32 0.0, %v1435
    %v1437 = vpop.f32.mrf.mxu0
    %1438 = vdwg.mxu0
    %v1439 = vadd.f32 %v1363, %v1436
    %v1440 = vxor.u32 %v1439, 2147483648
    %v1441 = vmul.f32 %v1440, 1.442695
    %v1442 = vpow.pop %v1441
    %v1443 = vadd.f32 %v1442, 1.0
    %v1444 = vrcp.pop %v1443
    %v1445 = vmul.f32 1.0, %v1444
    %v1446 = vtanh.pop %v1439
    %v1447 = vmul.f32 %v1445, %v1356
    %1449 = vrot.lane.b32.xlu0 %v1446, 64
    %v1450 = vpop.permute.xlu0 %1449
    %v1452 = vmul.f32 %v1445, %v1450
    %1454 = vrot.lane.b32.xlu0 %v1452, 32
    %v1455 = vpop.permute.xlu0 %1454
    %v1457 = vadd.f32 %v1447, %v1455
    %v1458 = vtanh.pop %v1457
    %1460 = vrot.lane.b32.xlu0 %v1458, 64
    %v1461 = vpop.permute.xlu0 %1460
    %v1463 = vmul.f32 %v1445, %v1461
    %v1464 = vlaneseq
    %v1465 = vshrl.u32 %v1464, 7
    %v1466 = vsub.s32 1, %v1465
    %v1467 = vrot.slane %v37, %v1466
    %1469 = vrot.lane.b32.xlu0 %v1463, 32
    %v1470 = vpop.permute.xlu0 %1469
    %v1471 = vsel %vm658, %v1470, 0
    %1473 = vmatprep.subr.mxu0 0.0
    %1474 = vmatpush1.msra.mxu0 0.0
    %1475 = vmatprep.subr.mxu0 0.0
    %1476 = vmatpush1.msra.mxu0 0.0
    %1477 = vmatprep.subr.mxu0 0.0
    %1478 = vmatpush1.msra.mxu0 0.0
    %1479 = vmatprep.subr.mxu0 0.0
    %1480 = vmatpush1.msra.mxu0 0.0
    %1481 = vmatprep.subr.mxu0 0.0
    %1482 = vmatpush1.msra.mxu0 0.0
    %1483 = vmatprep.subr.mxu0 0.0
    %1484 = vmatpush1.msra.mxu0 0.0
    %1485 = vmatprep.subr.mxu0 0.0
    %1486 = vmatpush1.msra.mxu0 0.0
    %1487 = vmatprep.subr.mxu0 0.0
    %1488 = vmatpush1.msra.mxu0 0.0
    %1489 = vmatprep.subr.mxu0 0.0
    %1490 = vmatpush1.msra.mxu0 0.0
    %1491 = vmatprep.subr.mxu0 0.0
    %1492 = vmatpush1.msra.mxu0 0.0
    %1493 = vmatprep.subr.mxu0 0.0
    %1494 = vmatpush1.msra.mxu0 0.0
    %1495 = vmatprep.subr.mxu0 0.0
    %1496 = vmatpush1.msra.mxu0 0.0
    %1497 = vmatprep.subr.mxu0 0.0
    %1498 = vmatpush1.msra.mxu0 %v32
    %1499 = vmatprep.subr.mxu0 0.0
    %1500 = vmatpush1.msra.mxu0 %v31
    %1501 = vmatprep.subr.mxu0 0.0
    %1502 = vmatpush1.msra.mxu0 %v30
    %1503 = vmatprep.subr.mxu0 0.0
    %1504 = vmatpush1.msra.mxu0 %v29
    %1505 = vmatprep.subr.mxu0 0.0
    %1506 = vmatpush2.msra.mxu0 0.0
    %1507 = vmatprep.subr.mxu0 0.0
    %1508 = vmatpush2.msra.mxu0 0.0
    %1509 = vmatprep.subr.mxu0 0.0
    %1510 = vmatpush2.msra.mxu0 0.0
    %1511 = vmatprep.subr.mxu0 0.0
    %1512 = vmatpush2.msra.mxu0 0.0
    %1513 = vmatprep.subr.mxu0 0.0
    %1514 = vmatpush2.msra.mxu0 0.0
    %1515 = vmatprep.subr.mxu0 0.0
    %1516 = vmatpush2.msra.mxu0 0.0
    %1517 = vmatprep.subr.mxu0 0.0
    %1518 = vmatpush2.msra.mxu0 0.0
    %1519 = vmatprep.subr.mxu0 0.0
    %1520 = vmatpush2.msra.mxu0 0.0
    %1521 = vmatprep.subr.mxu0 0.0
    %1522 = vmatpush2.msra.mxu0 0.0
    %1523 = vmatprep.subr.mxu0 0.0
    %1524 = vmatpush2.msra.mxu0 0.0
    %1525 = vmatprep.subr.mxu0 0.0
    %1526 = vmatpush2.msra.mxu0 0.0
    %1527 = vmatprep.subr.mxu0 0.0
    %1528 = vmatpush2.msra.mxu0 0.0
    %1529 = vmatprep.subr.mxu0 0.0
    %1530 = vmatpush2.msra.mxu0 0.0
    %1531 = vmatprep.subr.mxu0 0.0
    %1532 = vmatpush2.msra.mxu0 0.0
    %1533 = vmatprep.subr.mxu0 0.0
    %1534 = vmatpush2.msra.mxu0 0.0
    %1535 = vmatprep.subr.mxu0 0.0
    %1536 = vmatpush2.msra.mxu0 0.0
    %1537 = vmatprep.mubr.f32.mxu0 0.0
    %1538 = vmatmul.mubr.f32.gmra.mxu0 %v1471
    %v1539 = vpop.f32.mrf.mxu0
    %v1540 = vadd.f32 %v1467, %v1539
    %v1541 = vpop.f32.mrf.mxu0
    %1542 = vdwg.mxu0
    %v1543 = vmax.f32 %v1540, 0.0
    %v1544 = vlaneseq
    %v1545 = vshrl.u32 %v1544, 7
    %v1546 = vsub.s32 2, %v1545
    %v1547 = vrot.slane %v37, %v1546
    %v1549 = vsel %vm658, %v1543, 0
    %1551 = vmatprep.subr.mxu0 0.0
    %1552 = vmatpush1.msra.mxu0 0.0
    %1553 = vmatprep.subr.mxu0 0.0
    %1554 = vmatpush1.msra.mxu0 0.0
    %1555 = vmatprep.subr.mxu0 0.0
    %1556 = vmatpush1.msra.mxu0 0.0
    %1557 = vmatprep.subr.mxu0 0.0
    %1558 = vmatpush1.msra.mxu0 0.0
    %1559 = vmatprep.subr.mxu0 0.0
    %1560 = vmatpush1.msra.mxu0 0.0
    %1561 = vmatprep.subr.mxu0 0.0
    %1562 = vmatpush1.msra.mxu0 0.0
    %1563 = vmatprep.subr.mxu0 0.0
    %1564 = vmatpush1.msra.mxu0 0.0
    %1565 = vmatprep.subr.mxu0 0.0
    %1566 = vmatpush1.msra.mxu0 0.0
    %1567 = vmatprep.subr.mxu0 0.0
    %1568 = vmatpush1.msra.mxu0 0.0
    %1569 = vmatprep.subr.mxu0 0.0
    %1570 = vmatpush1.msra.mxu0 0.0
    %1571 = vmatprep.subr.mxu0 0.0
    %1572 = vmatpush1.msra.mxu0 0.0
    %1573 = vmatprep.subr.mxu0 0.0
    %1574 = vmatpush1.msra.mxu0 0.0
    %1575 = vmatprep.subr.mxu0 0.0
    %1576 = vmatpush1.msra.mxu0 %v36
    %1577 = vmatprep.subr.mxu0 0.0
    %1578 = vmatpush1.msra.mxu0 %v35
    %1579 = vmatprep.subr.mxu0 0.0
    %1580 = vmatpush1.msra.mxu0 %v34
    %1581 = vmatprep.subr.mxu0 0.0
    %1582 = vmatpush1.msra.mxu0 %v33
    %1583 = vmatprep.subr.mxu0 0.0
    %1584 = vmatpush2.msra.mxu0 0.0
    %1585 = vmatprep.subr.mxu0 0.0
    %1586 = vmatpush2.msra.mxu0 0.0
    %1587 = vmatprep.subr.mxu0 0.0
    %1588 = vmatpush2.msra.mxu0 0.0
    %1589 = vmatprep.subr.mxu0 0.0
    %1590 = vmatpush2.msra.mxu0 0.0
    %1591 = vmatprep.subr.mxu0 0.0
    %1592 = vmatpush2.msra.mxu0 0.0
    %1593 = vmatprep.subr.mxu0 0.0
    %1594 = vmatpush2.msra.mxu0 0.0
    %1595 = vmatprep.subr.mxu0 0.0
    %1596 = vmatpush2.msra.mxu0 0.0
    %1597 = vmatprep.subr.mxu0 0.0
    %1598 = vmatpush2.msra.mxu0 0.0
    %1599 = vmatprep.subr.mxu0 0.0
    %1600 = vmatpush2.msra.mxu0 0.0
    %1601 = vmatprep.subr.mxu0 0.0
    %1602 = vmatpush2.msra.mxu0 0.0
    %1603 = vmatprep.subr.mxu0 0.0
    %1604 = vmatpush2.msra.mxu0 0.0
    %1605 = vmatprep.subr.mxu0 0.0
    %1606 = vmatpush2.msra.mxu0 0.0
    %1607 = vmatprep.subr.mxu0 0.0
    %1608 = vmatpush2.msra.mxu0 0.0
    %1609 = vmatprep.subr.mxu0 0.0
    %1610 = vmatpush2.msra.mxu0 0.0
    %1611 = vmatprep.subr.mxu0 0.0
    %1612 = vmatpush2.msra.mxu0 0.0
    %1613 = vmatprep.subr.mxu0 0.0
    %1614 = vmatpush2.msra.mxu0 0.0
    %1615 = vmatprep.mubr.f32.mxu0 0.0
    %1616 = vmatmul.mubr.f32.gmra.mxu0 %v1549
    %v1617 = vpop.f32.mrf.mxu0
    %v1618 = vadd.f32 %v1547, %v1617
    %v1619 = vpop.f32.mrf.mxu0
    %1620 = vdwg.mxu0
    %1621 = vst [vmem:[#allocation3] sm:$0x3] %v1618
    // Predicated region
    $region26: #{forward_pallas.1} parent=1 // pred_check
      _
    $region27: #{forward_pallas.1} parent=1 // pred_check_branch
      %1623 = sbr.rel (0) target = $region29
    $region28: #{forward_pallas.1} parent=1 // pred_region
      %s1625 = ssub.s32 32, 32
      %1626 = vsyncadd [#allocation4], %s1625
      %s1628 = sshll.u32 [#allocation3], 4
      %s1629 = int_to_ptr.vmem [resolvable:$true] %s1628
      %1631 = dma.vmem_to_hbm [thread:$0]  %s1629, 32, %s6, [#allocation4]
    $region29: #{forward_pallas.1} parent=1 // pred_fallthru
      _
    // Predicated region
    $region30: #{forward_pallas.1} parent=1 // pred_check
      _
    $region31: #{forward_pallas.1} parent=1 // pred_check_branch
      %1633 = sbr.rel (0) target = $region33
    $region32: #{forward_pallas.1} parent=1 // pred_region
      %1634 = dma.done [#allocation4], 32
    $region33: #{forward_pallas.1} parent=1 // pred_fallthru
      _
    %1635 = vsyncpa [#allocation4], 1

</llo_original>
